<compile_context>
chip_gen: v7x
topology: tpu7x:2x2x1
jax: 0.10.0
libtpu: 0.0.40
codegen_flags: <defaults>
</compile_context>

<pallas_src>
import functools

import jax
import jax.numpy as jnp
from jax import lax
from jax.experimental import pallas as pl
from jax.experimental.pallas import tpu as pltpu

SILOSS_LAMBD = 0.5
GRAD_LOSS_WEIGHT = 0.5
START_SCALE = 1
NUM_SCALES = 4
_OUT_LANES = 128  # lane-dense partial-sum row written by each grid step


def _shift(x, delta, axis):
    """y[..., i, ...] = x[..., i + delta, ...] along `axis` (circular wrap)."""
    n = x.shape[axis]
    return pltpu.roll(x, shift=(-delta) % n, axis=axis)


def _sel(m, mc, a, b):
    """Exact 0/1 blend m*a + mc*b (m + mc == 1); m/mc are broadcastable f32."""
    return m * a + mc * b


def _mixed_loss_kernel(pred_ref, target_ref, mask_ref, out_ref, *, scales, tb):
    h, w = pred_ref.shape[1], pred_ref.shape[2]

    # Hoisted per-step constants: tiny (H,1)/(1,W) index vectors.
    ri = lax.broadcasted_iota(jnp.int32, (h, 1), 0)
    ci = lax.broadcasted_iota(jnp.int32, (1, w), 1)

    # ---- pass 1: SiLoss moments (sublane-first reductions) + per-image diff ----
    row_m = jnp.zeros((1, w), jnp.float32)
    row_d = jnp.zeros((1, w), jnp.float32)
    row_d2 = jnp.zeros((1, w), jnp.float32)
    curs = []
    for i in range(tb):
        p = pred_ref[i].astype(jnp.float32)
        t = target_ref[i].astype(jnp.float32)
        m = mask_ref[i].astype(jnp.float32)
        dm = (t - p) * m
        row_m = row_m + jnp.sum(m, axis=0, keepdims=True)
        row_d = row_d + jnp.sum(dm, axis=0, keepdims=True)
        row_d2 = row_d2 + jnp.sum(dm * dm, axis=0, keepdims=True)
        curs.append(p - t)  # diff used by the gradient loss

    # ---- pass 2: multi-scale Sobel on a stride-s sparse pooled layout ----
    # `curs[i]` always stays (H, W); at scale s the pooled value of pooled
    # pixel (r, c) lives at physical position (s*r, s*c).  Pooling s -> 2s is a
    # 2x2 mean done with two rolls; the normalized replicate-padded Sobel is a
    # separable +-s shift stencil (rolls + edge-clamp blends + VPU adds).
    grad_rows = []
    stride = 1
    for s in scales:
        hp, wp = h // s, w // s

        # hierarchical 2x2 mean pooling up to stride s
        while stride < s:
            ps = stride
            for i in range(tb):
                c0 = curs[i]
                c1 = c0 + _shift(c0, ps, axis=0)
                curs[i] = 0.25 * (c1 + _shift(c1, ps, axis=1))
            stride *= 2

        # per-scale edge / validity vectors (hoisted outside the image loop)
        top = (ri < s).astype(jnp.float32);             top_c = 1.0 - top
        bot = (ri >= s * (hp - 1)).astype(jnp.float32); bot_c = 1.0 - bot
        lft = (ci < s).astype(jnp.float32);             lft_c = 1.0 - lft
        rgt = (ci >= s * (wp - 1)).astype(jnp.float32); rgt_c = 1.0 - rgt
        vr = (((ri & (s - 1)) == 0) & (ri < s * hp)).astype(jnp.float32)
        vc = (((ci & (s - 1)) == 0) & (ci < s * wp)).astype(jnp.float32)

        g_row = jnp.zeros((1, w), jnp.float32)
        for i in range(tb):
            c = curs[i]
            # replicate-clamped +-1 pooled-pixel neighbours (physical shift s)
            p_u = _sel(top, top_c, c, _shift(c, -s, axis=0))   # row above
            p_d = _sel(bot, bot_c, c, _shift(c, s, axis=0))    # row below
            p_l = _sel(lft, lft_c, c, _shift(c, -s, axis=1))   # col to the left
            p_r = _sel(rgt, rgt_c, c, _shift(c, s, axis=1))    # col to the right
            dc = p_r - p_l                                     # column difference
            dr = p_d - p_u                                     # row difference
            # normalized sobel = [1,2,1]-smooth of the orthogonal difference, /8
            dx = (_sel(top, top_c, dc, _shift(dc, -s, axis=0)) + 2.0 * dc
                  + _sel(bot, bot_c, dc, _shift(dc, s, axis=0))) * 0.125
            dy = (_sel(lft, lft_c, dr, _shift(dr, -s, axis=1)) + 2.0 * dr
                  + _sel(rgt, rgt_c, dr, _shift(dr, s, axis=1))) * 0.125
            g = (jnp.abs(dx) + jnp.abs(dy)) * vr
            g_row = g_row + jnp.sum(g, axis=0, keepdims=True)
        grad_rows.append(g_row * vc)  # column validity applied once per scale

    # ---- one cross-lane reduce per quantity, lane-dense (1,128) output row ----
    vals = [jnp.sum(row_m), jnp.sum(row_d), jnp.sum(row_d2)]
    vals += [jnp.sum(gr) for gr in grad_rows]
    lane = lax.broadcasted_iota(jnp.int32, (1, _OUT_LANES), 1)
    acc = jnp.zeros((1, _OUT_LANES), jnp.float32)
    for idx, v in enumerate(vals):
        acc = jnp.where(lane == idx, v, acc)
    out_ref[0] = acc


def _pick_batch_block(b, h, w):
    # Aim for ~128K pred elements (~512 KiB f32) per grid step to amortize the
    # per-step overhead on small images, but keep >=2 grid steps when possible
    # so both v7x TensorCores get work.
    tb = max(1, min(b, (128 * 1024) // max(1, h * w)))
    if b >= 2:
        tb = min(tb, max(1, b // 2))
    while b % tb:
        tb -= 1
    return tb


@functools.partial(jax.jit, static_argnames=("siloss_lambd", "grad_loss_weight"))
def mixed_loss(pred, target, valid_mask,
               siloss_lambd=SILOSS_LAMBD, grad_loss_weight=GRAD_LOSS_WEIGHT):
    assert pred.ndim == 3 and target.shape == pred.shape
    b, h, w = pred.shape
    scales = tuple(START_SCALE * 2 ** i for i in range(NUM_SCALES))
    assert scales[0] == 1 and all(s & (s - 1) == 0 for s in scales)
    assert h >= scales[-1] and w >= scales[-1]

    mask_i8 = valid_mask.astype(jnp.int8)  # 1 byte/px of HBM traffic
    tb = _pick_batch_block(b, h, w)
    grid = (b // tb,)

    # Per-step VMEM: double-buffered input blocks + in-kernel f32 temporaries.
    block_bytes = tb * h * w * (pred.dtype.itemsize + target.dtype.itemsize + 1)
    work_bytes = (tb + 12) * h * w * 4
    vmem_limit = int(min(56 * 2 ** 20,
                         max(16 * 2 ** 20, 2 * block_bytes + work_bytes)))
    # TODO(synk): for very large H*W (f32 at >=2k^2) row-tile with a 1-row halo
    # instead of whole-image blocks to stay inside v7x's 64 MiB VMEM.

    kernel = functools.partial(_mixed_loss_kernel, scales=scales, tb=tb)
    partial_sums = pl.pallas_call(
        kernel,
        out_shape=jax.ShapeDtypeStruct((grid[0], 1, _OUT_LANES), jnp.float32),
        grid=grid,
        in_specs=[
            pl.BlockSpec((tb, h, w), lambda i: (i, 0, 0)),
            pl.BlockSpec((tb, h, w), lambda i: (i, 0, 0)),
            pl.BlockSpec((tb, h, w), lambda i: (i, 0, 0)),
        ],
        out_specs=pl.BlockSpec((1, 1, _OUT_LANES), lambda i: (i, 0, 0)),
        compiler_params=pltpu.CompilerParams(
            dimension_semantics=("parallel",),
            vmem_limit_bytes=vmem_limit),
    )(pred, target, mask_i8)

    sums = jnp.sum(partial_sums[:, 0, :], axis=0)  # (128,)
    sm, sd, sd2 = sums[0], sums[1], sums[2]

    # SiLoss: sqrt(mean(diff^2) - lambd * mean(diff)^2) over valid pixels,
    # clamped at 0 so fp rounding cannot produce NaN.
    mean_d = sd / sm
    mean_d2 = sd2 / sm
    si_loss = jnp.sqrt(jnp.maximum(mean_d2 - siloss_lambd * mean_d * mean_d, 0.0))

    # MultiScaleGradient: sum_s [ sum|sobel(avgpool_s(pred-target))| /
    #   (2*B*hp*wp) * B * 2 ] / num_scales.  The non-NaN count of the torch code
    # is static for finite inputs, so it is folded here instead of in-kernel.
    # TODO(synk): torch's isnan filtering of sobel outputs is not replicated.
    grad_loss = jnp.float32(0.0)
    for k, s in enumerate(scales):
        hp, wp = h // s, w // s
        grad_loss = grad_loss + sums[3 + k] / jnp.float32(2 * b * hp * wp) * b * 2.0
    grad_loss = grad_loss / NUM_SCALES

    total = si_loss + grad_loss_weight * grad_loss
    return total, si_loss, grad_loss


# --------------------------- pure-JAX reference ------------------------------
def _reference(pred, target, valid_mask,
               siloss_lambd=SILOSS_LAMBD, grad_loss_weight=GRAD_LOSS_WEIGHT):
    pred = pred.astype(jnp.float32)
    target = target.astype(jnp.float32)
    m = valid_mask.astype(jnp.float32)
    b, h, w = pred.shape

    diff = target - pred
    n = m.sum()
    mean_d = (diff * m).sum() / n
    mean_d2 = (diff * diff * m).sum() / n
    si = jnp.sqrt(mean_d2 - siloss_lambd * mean_d ** 2)

    d = pred - target
    grad = jnp.float32(0.0)
    for i in range(NUM_SCALES):
        s = START_SCALE * 2 ** i
        hp, wp = h // s, w // s
        pooled = d[:, :hp * s, :wp * s].reshape(b, hp, s, wp, s).mean(axis=(2, 4))
        pad = jnp.pad(pooled, ((0, 0), (1, 1), (1, 1)), mode="edge")
        dx = (-pad[:, :-2, :-2] + pad[:, :-2, 2:]
              - 2 * pad[:, 1:-1, :-2] + 2 * pad[:, 1:-1, 2:]
              - pad[:, 2:, :-2] + pad[:, 2:, 2:]) / 8.0
        dy = (-pad[:, :-2, :-2] - 2 * pad[:, :-2, 1:-1] - pad[:, :-2, 2:]
              + pad[:, 2:, :-2] + 2 * pad[:, 2:, 1:-1] + pad[:, 2:, 2:]) / 8.0
        gsum = jnp.abs(dx).sum() + jnp.abs(dy).sum()
        cnt = 2.0 * b * hp * wp
        grad = grad + gsum / cnt * b * 2.0
    grad = grad / NUM_SCALES
    return si + grad_loss_weight * grad, si, grad


if __name__ == "__main__":
    key = jax.random.PRNGKey(0)
    k_pred, k_tgt, k_mask = jax.random.split(key, 3)

    # Small depth-map-like shapes; W=128 keeps every stencil roll lane-aligned.
    B, H, W = 2, 32, 128
    pred = jax.random.normal(k_pred, (B, H, W), dtype=jnp.float32) + 2.0
    target = jax.random.uniform(k_tgt, (B, H, W),
                                minval=0.5, maxval=5.0, dtype=jnp.float32)
    valid_mask = jax.random.bernoulli(k_mask, p=0.8, shape=(B, H, W))

    total, si, grad = mixed_loss(pred, target, valid_mask)
    jax.block_until_ready(total)

    ref_total, ref_si, ref_grad = _reference(pred, target, valid_mask)
    assert jnp.isfinite(total) and jnp.isfinite(si) and jnp.isfinite(grad)
    assert jnp.allclose(si, ref_si, rtol=1e-2, atol=1e-3), (si, ref_si)
    assert jnp.allclose(grad, ref_grad, rtol=1e-2, atol=1e-3), (grad, ref_grad)
    assert jnp.allclose(total, ref_total, rtol=1e-2, atol=1e-3), (total, ref_total)
    print("KERNEL_OK")
</pallas_src>

<mosaic_0001>
module attributes {stable_mosaic.version = 11 : i64} {
  func.func @_mixed_loss_kernel(%arg0: i32, %arg1: memref<1x32x128xf32, #tpu.memory_space<vmem>>, %arg2: memref<1x32x128xf32, #tpu.memory_space<vmem>>, %arg3: memref<1x32x128xi8, #tpu.memory_space<vmem>>, %arg4: memref<1x1x128xf32, #tpu.memory_space<vmem>>) attributes {dimension_semantics = [#tpu.dimension_semantics<parallel>], iteration_bounds = array<i64: 2>, scalar_prefetch = 0 : i64, scratch_operands = 0 : i64, tpu.core_type = #tpu.core_type<tc>, window_params = [{transform_indices = @transform_0, window_bounds = array<i64: 1, 32, 128>}, {transform_indices = @transform_1, window_bounds = array<i64: 1, 32, 128>}, {transform_indices = @transform_2, window_bounds = array<i64: 1, 32, 128>}, {transform_indices = @transform_3, window_bounds = array<i64: 1, 1, 128>}]} {
    %0 = tpu.iota {dimensions = array<i32: 0>} : vector<32x1xi32>
    %1 = tpu.iota {dimensions = array<i32: 1>} : vector<1x128xi32>
    %cst = arith.constant 0.000000e+00 : f32
    %2 = vector.broadcast %cst : f32 to vector<1x128xf32>
    %cst_0 = arith.constant 0.000000e+00 : f32
    %3 = vector.broadcast %cst_0 : f32 to vector<1x128xf32>
    %cst_1 = arith.constant 0.000000e+00 : f32
    %4 = vector.broadcast %cst_1 : f32 to vector<1x128xf32>
    %c0 = arith.constant 0 : index
    %c0_2 = arith.constant 0 : index
    %c0_3 = arith.constant 0 : index
    %5 = vector.load %arg1[%c0, %c0_2, %c0_3] : memref<1x32x128xf32, #tpu.memory_space<vmem>>, vector<1x32x128xf32>
    %6 = vector.shape_cast %5 : vector<1x32x128xf32> to vector<32x128xf32>
    %c0_4 = arith.constant 0 : index
    %c0_5 = arith.constant 0 : index
    %c0_6 = arith.constant 0 : index
    %7 = vector.load %arg2[%c0_4, %c0_5, %c0_6] : memref<1x32x128xf32, #tpu.memory_space<vmem>>, vector<1x32x128xf32>
    %8 = vector.shape_cast %7 : vector<1x32x128xf32> to vector<32x128xf32>
    %c0_7 = arith.constant 0 : index
    %c0_8 = arith.constant 0 : index
    %c0_9 = arith.constant 0 : index
    %9 = vector.load %arg3[%c0_7, %c0_8, %c0_9] : memref<1x32x128xi8, #tpu.memory_space<vmem>>, vector<1x32x128xi8>
    %10 = vector.shape_cast %9 : vector<1x32x128xi8> to vector<32x128xi8>
    %11 = arith.sitofp %10 : vector<32x128xi8> to vector<32x128xf32>
    %12 = arith.subf %8, %6 : vector<32x128xf32>
    %13 = arith.mulf %12, %11 : vector<32x128xf32>
    %cst_10 = arith.constant dense<0.000000e+00> : vector<128xf32>
    %14 = vector.multi_reduction <add>, %11, %cst_10 [0] : vector<32x128xf32> to vector<128xf32>
    %15 = vector.shape_cast %14 : vector<128xf32> to vector<1x128xf32>
    %16 = arith.addf %2, %15 : vector<1x128xf32>
    %cst_11 = arith.constant dense<0.000000e+00> : vector<128xf32>
    %17 = vector.multi_reduction <add>, %13, %cst_11 [0] : vector<32x128xf32> to vector<128xf32>
    %18 = vector.shape_cast %17 : vector<128xf32> to vector<1x128xf32>
    %19 = arith.addf %3, %18 : vector<1x128xf32>
    %20 = arith.mulf %13, %13 : vector<32x128xf32>
    %cst_12 = arith.constant dense<0.000000e+00> : vector<128xf32>
    %21 = vector.multi_reduction <add>, %20, %cst_12 [0] : vector<32x128xf32> to vector<128xf32>
    %22 = vector.shape_cast %21 : vector<128xf32> to vector<1x128xf32>
    %23 = arith.addf %4, %22 : vector<1x128xf32>
    %24 = arith.subf %6, %8 : vector<32x128xf32>
    %c1_i32 = arith.constant 1 : i32
    %25 = vector.broadcast %c1_i32 : i32 to vector<32x1xi32>
    %26 = arith.cmpi slt, %0, %25 : vector<32x1xi32>
    %27 = arith.extui %26 : vector<32x1xi1> to vector<32x1xi32>
    %28 = arith.sitofp %27 : vector<32x1xi32> to vector<32x1xf32>
    %cst_13 = arith.constant 1.000000e+00 : f32
    %29 = vector.broadcast %cst_13 : f32 to vector<32x1xf32>
    %30 = arith.subf %29, %28 : vector<32x1xf32>
    %c31_i32 = arith.constant 31 : i32
    %31 = vector.broadcast %c31_i32 : i32 to vector<32x1xi32>
    %32 = arith.cmpi sge, %0, %31 : vector<32x1xi32>
    %33 = arith.extui %32 : vector<32x1xi1> to vector<32x1xi32>
    %34 = arith.sitofp %33 : vector<32x1xi32> to vector<32x1xf32>
    %cst_14 = arith.constant 1.000000e+00 : f32
    %35 = vector.broadcast %cst_14 : f32 to vector<32x1xf32>
    %36 = arith.subf %35, %34 : vector<32x1xf32>
    %c1_i32_15 = arith.constant 1 : i32
    %37 = vector.broadcast %c1_i32_15 : i32 to vector<1x128xi32>
    %38 = arith.cmpi slt, %1, %37 : vector<1x128xi32>
    %39 = arith.extui %38 : vector<1x128xi1> to vector<1x128xi32>
    %40 = arith.sitofp %39 : vector<1x128xi32> to vector<1x128xf32>
    %cst_16 = arith.constant 1.000000e+00 : f32
    %41 = vector.broadcast %cst_16 : f32 to vector<1x128xf32>
    %42 = arith.subf %41, %40 : vector<1x128xf32>
    %c127_i32 = arith.constant 127 : i32
    %43 = vector.broadcast %c127_i32 : i32 to vector<1x128xi32>
    %44 = arith.cmpi sge, %1, %43 : vector<1x128xi32>
    %45 = arith.extui %44 : vector<1x128xi1> to vector<1x128xi32>
    %46 = arith.sitofp %45 : vector<1x128xi32> to vector<1x128xf32>
    %cst_17 = arith.constant 1.000000e+00 : f32
    %47 = vector.broadcast %cst_17 : f32 to vector<1x128xf32>
    %48 = arith.subf %47, %46 : vector<1x128xf32>
    %c0_i32 = arith.constant 0 : i32
    %49 = vector.broadcast %c0_i32 : i32 to vector<32x1xi32>
    %50 = arith.andi %0, %49 : vector<32x1xi32>
    %c0_i32_18 = arith.constant 0 : i32
    %51 = vector.broadcast %c0_i32_18 : i32 to vector<32x1xi32>
    %52 = arith.cmpi eq, %50, %51 : vector<32x1xi32>
    %c32_i32 = arith.constant 32 : i32
    %53 = vector.broadcast %c32_i32 : i32 to vector<32x1xi32>
    %54 = arith.cmpi slt, %0, %53 : vector<32x1xi32>
    %55 = arith.andi %52, %54 : vector<32x1xi1>
    %56 = arith.extui %55 : vector<32x1xi1> to vector<32x1xi32>
    %57 = arith.sitofp %56 : vector<32x1xi32> to vector<32x1xf32>
    %c0_i32_19 = arith.constant 0 : i32
    %58 = vector.broadcast %c0_i32_19 : i32 to vector<1x128xi32>
    %59 = arith.andi %1, %58 : vector<1x128xi32>
    %c0_i32_20 = arith.constant 0 : i32
    %60 = vector.broadcast %c0_i32_20 : i32 to vector<1x128xi32>
    %61 = arith.cmpi eq, %59, %60 : vector<1x128xi32>
    %c128_i32 = arith.constant 128 : i32
    %62 = vector.broadcast %c128_i32 : i32 to vector<1x128xi32>
    %63 = arith.cmpi slt, %1, %62 : vector<1x128xi32>
    %64 = arith.andi %61, %63 : vector<1x128xi1>
    %65 = arith.extui %64 : vector<1x128xi1> to vector<1x128xi32>
    %66 = arith.sitofp %65 : vector<1x128xi32> to vector<1x128xf32>
    %cst_21 = arith.constant 0.000000e+00 : f32
    %67 = vector.broadcast %cst_21 : f32 to vector<1x128xf32>
    %c1_i32_22 = arith.constant 1 : i32
    %68 = tpu.dynamic_rotate %24 by %c1_i32_22 dim 0 : vector<32x128xf32>, i32 -> vector<32x128xf32>
    %69 = vector.broadcast %28 : vector<32x1xf32> to vector<32x128xf32>
    %70 = arith.mulf %69, %24 : vector<32x128xf32>
    %71 = vector.broadcast %30 : vector<32x1xf32> to vector<32x128xf32>
    %72 = arith.mulf %71, %68 : vector<32x128xf32>
    %73 = arith.addf %70, %72 : vector<32x128xf32>
    %c31_i32_23 = arith.constant 31 : i32
    %74 = tpu.dynamic_rotate %24 by %c31_i32_23 dim 0 : vector<32x128xf32>, i32 -> vector<32x128xf32>
    %75 = vector.broadcast %34 : vector<32x1xf32> to vector<32x128xf32>
    %76 = arith.mulf %75, %24 : vector<32x128xf32>
    %77 = vector.broadcast %36 : vector<32x1xf32> to vector<32x128xf32>
    %78 = arith.mulf %77, %74 : vector<32x128xf32>
    %79 = arith.addf %76, %78 : vector<32x128xf32>
    %c1_i32_24 = arith.constant 1 : i32
    %80 = tpu.dynamic_rotate %24 by %c1_i32_24 dim 1 : vector<32x128xf32>, i32 -> vector<32x128xf32>
    %81 = vector.broadcast %40 : vector<1x128xf32> to vector<32x128xf32>
    %82 = arith.mulf %81, %24 : vector<32x128xf32>
    %83 = vector.broadcast %42 : vector<1x128xf32> to vector<32x128xf32>
    %84 = arith.mulf %83, %80 : vector<32x128xf32>
    %85 = arith.addf %82, %84 : vector<32x128xf32>
    %c127_i32_25 = arith.constant 127 : i32
    %86 = tpu.dynamic_rotate %24 by %c127_i32_25 dim 1 : vector<32x128xf32>, i32 -> vector<32x128xf32>
    %87 = vector.broadcast %46 : vector<1x128xf32> to vector<32x128xf32>
    %88 = arith.mulf %87, %24 : vector<32x128xf32>
    %89 = vector.broadcast %48 : vector<1x128xf32> to vector<32x128xf32>
    %90 = arith.mulf %89, %86 : vector<32x128xf32>
    %91 = arith.addf %88, %90 : vector<32x128xf32>
    %92 = arith.subf %91, %85 : vector<32x128xf32>
    %93 = arith.subf %79, %73 : vector<32x128xf32>
    %c1_i32_26 = arith.constant 1 : i32
    %94 = tpu.dynamic_rotate %92 by %c1_i32_26 dim 0 : vector<32x128xf32>, i32 -> vector<32x128xf32>
    %95 = vector.broadcast %28 : vector<32x1xf32> to vector<32x128xf32>
    %96 = arith.mulf %95, %92 : vector<32x128xf32>
    %97 = vector.broadcast %30 : vector<32x1xf32> to vector<32x128xf32>
    %98 = arith.mulf %97, %94 : vector<32x128xf32>
    %99 = arith.addf %96, %98 : vector<32x128xf32>
    %cst_27 = arith.constant 2.000000e+00 : f32
    %100 = vector.broadcast %cst_27 : f32 to vector<32x128xf32>
    %101 = arith.mulf %100, %92 : vector<32x128xf32>
    %102 = arith.addf %99, %101 : vector<32x128xf32>
    %c31_i32_28 = arith.constant 31 : i32
    %103 = tpu.dynamic_rotate %92 by %c31_i32_28 dim 0 : vector<32x128xf32>, i32 -> vector<32x128xf32>
    %104 = vector.broadcast %34 : vector<32x1xf32> to vector<32x128xf32>
    %105 = arith.mulf %104, %92 : vector<32x128xf32>
    %106 = vector.broadcast %36 : vector<32x1xf32> to vector<32x128xf32>
    %107 = arith.mulf %106, %103 : vector<32x128xf32>
    %108 = arith.addf %105, %107 : vector<32x128xf32>
    %109 = arith.addf %102, %108 : vector<32x128xf32>
    %cst_29 = arith.constant 1.250000e-01 : f32
    %110 = vector.broadcast %cst_29 : f32 to vector<32x128xf32>
    %111 = arith.mulf %109, %110 : vector<32x128xf32>
    %c1_i32_30 = arith.constant 1 : i32
    %112 = tpu.dynamic_rotate %93 by %c1_i32_30 dim 1 : vector<32x128xf32>, i32 -> vector<32x128xf32>
    %113 = vector.broadcast %40 : vector<1x128xf32> to vector<32x128xf32>
    %114 = arith.mulf %113, %93 : vector<32x128xf32>
    %115 = vector.broadcast %42 : vector<1x128xf32> to vector<32x128xf32>
    %116 = arith.mulf %115, %112 : vector<32x128xf32>
    %117 = arith.addf %114, %116 : vector<32x128xf32>
    %cst_31 = arith.constant 2.000000e+00 : f32
    %118 = vector.broadcast %cst_31 : f32 to vector<32x128xf32>
    %119 = arith.mulf %118, %93 : vector<32x128xf32>
    %120 = arith.addf %117, %119 : vector<32x128xf32>
    %c127_i32_32 = arith.constant 127 : i32
    %121 = tpu.dynamic_rotate %93 by %c127_i32_32 dim 1 : vector<32x128xf32>, i32 -> vector<32x128xf32>
    %122 = vector.broadcast %46 : vector<1x128xf32> to vector<32x128xf32>
    %123 = arith.mulf %122, %93 : vector<32x128xf32>
    %124 = vector.broadcast %48 : vector<1x128xf32> to vector<32x128xf32>
    %125 = arith.mulf %124, %121 : vector<32x128xf32>
    %126 = arith.addf %123, %125 : vector<32x128xf32>
    %127 = arith.addf %120, %126 : vector<32x128xf32>
    %cst_33 = arith.constant 1.250000e-01 : f32
    %128 = vector.broadcast %cst_33 : f32 to vector<32x128xf32>
    %129 = arith.mulf %127, %128 : vector<32x128xf32>
    %130 = math.absf %111 : vector<32x128xf32>
    %131 = math.absf %129 : vector<32x128xf32>
    %132 = arith.addf %130, %131 : vector<32x128xf32>
    %133 = vector.broadcast %57 : vector<32x1xf32> to vector<32x128xf32>
    %134 = arith.mulf %132, %133 : vector<32x128xf32>
    %cst_34 = arith.constant dense<0.000000e+00> : vector<128xf32>
    %135 = vector.multi_reduction <add>, %134, %cst_34 [0] : vector<32x128xf32> to vector<128xf32>
    %136 = vector.shape_cast %135 : vector<128xf32> to vector<1x128xf32>
    %137 = arith.addf %67, %136 : vector<1x128xf32>
    %138 = arith.mulf %137, %66 : vector<1x128xf32>
    %c31_i32_35 = arith.constant 31 : i32
    %139 = tpu.dynamic_rotate %24 by %c31_i32_35 dim 0 : vector<32x128xf32>, i32 -> vector<32x128xf32>
    %140 = arith.addf %24, %139 : vector<32x128xf32>
    %c127_i32_36 = arith.constant 127 : i32
    %141 = tpu.dynamic_rotate %140 by %c127_i32_36 dim 1 : vector<32x128xf32>, i32 -> vector<32x128xf32>
    %142 = arith.addf %140, %141 : vector<32x128xf32>
    %cst_37 = arith.constant 2.500000e-01 : f32
    %143 = vector.broadcast %cst_37 : f32 to vector<32x128xf32>
    %144 = arith.mulf %143, %142 : vector<32x128xf32>
    %c2_i32 = arith.constant 2 : i32
    %145 = vector.broadcast %c2_i32 : i32 to vector<32x1xi32>
    %146 = arith.cmpi slt, %0, %145 : vector<32x1xi32>
    %147 = arith.extui %146 : vector<32x1xi1> to vector<32x1xi32>
    %148 = arith.sitofp %147 : vector<32x1xi32> to vector<32x1xf32>
    %cst_38 = arith.constant 1.000000e+00 : f32
    %149 = vector.broadcast %cst_38 : f32 to vector<32x1xf32>
    %150 = arith.subf %149, %148 : vector<32x1xf32>
    %c30_i32 = arith.constant 30 : i32
    %151 = vector.broadcast %c30_i32 : i32 to vector<32x1xi32>
    %152 = arith.cmpi sge, %0, %151 : vector<32x1xi32>
    %153 = arith.extui %152 : vector<32x1xi1> to vector<32x1xi32>
    %154 = arith.sitofp %153 : vector<32x1xi32> to vector<32x1xf32>
    %cst_39 = arith.constant 1.000000e+00 : f32
    %155 = vector.broadcast %cst_39 : f32 to vector<32x1xf32>
    %156 = arith.subf %155, %154 : vector<32x1xf32>
    %c2_i32_40 = arith.constant 2 : i32
    %157 = vector.broadcast %c2_i32_40 : i32 to vector<1x128xi32>
    %158 = arith.cmpi slt, %1, %157 : vector<1x128xi32>
    %159 = arith.extui %158 : vector<1x128xi1> to vector<1x128xi32>
    %160 = arith.sitofp %159 : vector<1x128xi32> to vector<1x128xf32>
    %cst_41 = arith.constant 1.000000e+00 : f32
    %161 = vector.broadcast %cst_41 : f32 to vector<1x128xf32>
    %162 = arith.subf %161, %160 : vector<1x128xf32>
    %c126_i32 = arith.constant 126 : i32
    %163 = vector.broadcast %c126_i32 : i32 to vector<1x128xi32>
    %164 = arith.cmpi sge, %1, %163 : vector<1x128xi32>
    %165 = arith.extui %164 : vector<1x128xi1> to vector<1x128xi32>
    %166 = arith.sitofp %165 : vector<1x128xi32> to vector<1x128xf32>
    %cst_42 = arith.constant 1.000000e+00 : f32
    %167 = vector.broadcast %cst_42 : f32 to vector<1x128xf32>
    %168 = arith.subf %167, %166 : vector<1x128xf32>
    %c1_i32_43 = arith.constant 1 : i32
    %169 = vector.broadcast %c1_i32_43 : i32 to vector<32x1xi32>
    %170 = arith.andi %0, %169 : vector<32x1xi32>
    %c0_i32_44 = arith.constant 0 : i32
    %171 = vector.broadcast %c0_i32_44 : i32 to vector<32x1xi32>
    %172 = arith.cmpi eq, %170, %171 : vector<32x1xi32>
    %c32_i32_45 = arith.constant 32 : i32
    %173 = vector.broadcast %c32_i32_45 : i32 to vector<32x1xi32>
    %174 = arith.cmpi slt, %0, %173 : vector<32x1xi32>
    %175 = arith.andi %172, %174 : vector<32x1xi1>
    %176 = arith.extui %175 : vector<32x1xi1> to vector<32x1xi32>
    %177 = arith.sitofp %176 : vector<32x1xi32> to vector<32x1xf32>
    %c1_i32_46 = arith.constant 1 : i32
    %178 = vector.broadcast %c1_i32_46 : i32 to vector<1x128xi32>
    %179 = arith.andi %1, %178 : vector<1x128xi32>
    %c0_i32_47 = arith.constant 0 : i32
    %180 = vector.broadcast %c0_i32_47 : i32 to vector<1x128xi32>
    %181 = arith.cmpi eq, %179, %180 : vector<1x128xi32>
    %c128_i32_48 = arith.constant 128 : i32
    %182 = vector.broadcast %c128_i32_48 : i32 to vector<1x128xi32>
    %183 = arith.cmpi slt, %1, %182 : vector<1x128xi32>
    %184 = arith.andi %181, %183 : vector<1x128xi1>
    %185 = arith.extui %184 : vector<1x128xi1> to vector<1x128xi32>
    %186 = arith.sitofp %185 : vector<1x128xi32> to vector<1x128xf32>
    %cst_49 = arith.constant 0.000000e+00 : f32
    %187 = vector.broadcast %cst_49 : f32 to vector<1x128xf32>
    %c2_i32_50 = arith.constant 2 : i32
    %188 = tpu.dynamic_rotate %144 by %c2_i32_50 dim 0 : vector<32x128xf32>, i32 -> vector<32x128xf32>
    %189 = vector.broadcast %148 : vector<32x1xf32> to vector<32x128xf32>
    %190 = arith.mulf %189, %144 : vector<32x128xf32>
    %191 = vector.broadcast %150 : vector<32x1xf32> to vector<32x128xf32>
    %192 = arith.mulf %191, %188 : vector<32x128xf32>
    %193 = arith.addf %190, %192 : vector<32x128xf32>
    %c30_i32_51 = arith.constant 30 : i32
    %194 = tpu.dynamic_rotate %144 by %c30_i32_51 dim 0 : vector<32x128xf32>, i32 -> vector<32x128xf32>
    %195 = vector.broadcast %154 : vector<32x1xf32> to vector<32x128xf32>
    %196 = arith.mulf %195, %144 : vector<32x128xf32>
    %197 = vector.broadcast %156 : vector<32x1xf32> to vector<32x128xf32>
    %198 = arith.mulf %197, %194 : vector<32x128xf32>
    %199 = arith.addf %196, %198 : vector<32x128xf32>
    %c2_i32_52 = arith.constant 2 : i32
    %200 = tpu.dynamic_rotate %144 by %c2_i32_52 dim 1 : vector<32x128xf32>, i32 -> vector<32x128xf32>
    %201 = vector.broadcast %160 : vector<1x128xf32> to vector<32x128xf32>
    %202 = arith.mulf %201, %144 : vector<32x128xf32>
    %203 = vector.broadcast %162 : vector<1x128xf32> to vector<32x128xf32>
    %204 = arith.mulf %203, %200 : vector<32x128xf32>
    %205 = arith.addf %202, %204 : vector<32x128xf32>
    %c126_i32_53 = arith.constant 126 : i32
    %206 = tpu.dynamic_rotate %144 by %c126_i32_53 dim 1 : vector<32x128xf32>, i32 -> vector<32x128xf32>
    %207 = vector.broadcast %166 : vector<1x128xf32> to vector<32x128xf32>
    %208 = arith.mulf %207, %144 : vector<32x128xf32>
    %209 = vector.broadcast %168 : vector<1x128xf32> to vector<32x128xf32>
    %210 = arith.mulf %209, %206 : vector<32x128xf32>
    %211 = arith.addf %208, %210 : vector<32x128xf32>
    %212 = arith.subf %211, %205 : vector<32x128xf32>
    %213 = arith.subf %199, %193 : vector<32x128xf32>
    %c2_i32_54 = arith.constant 2 : i32
    %214 = tpu.dynamic_rotate %212 by %c2_i32_54 dim 0 : vector<32x128xf32>, i32 -> vector<32x128xf32>
    %215 = vector.broadcast %148 : vector<32x1xf32> to vector<32x128xf32>
    %216 = arith.mulf %215, %212 : vector<32x128xf32>
    %217 = vector.broadcast %150 : vector<32x1xf32> to vector<32x128xf32>
    %218 = arith.mulf %217, %214 : vector<32x128xf32>
    %219 = arith.addf %216, %218 : vector<32x128xf32>
    %cst_55 = arith.constant 2.000000e+00 : f32
    %220 = vector.broadcast %cst_55 : f32 to vector<32x128xf32>
    %221 = arith.mulf %220, %212 : vector<32x128xf32>
    %222 = arith.addf %219, %221 : vector<32x128xf32>
    %c30_i32_56 = arith.constant 30 : i32
    %223 = tpu.dynamic_rotate %212 by %c30_i32_56 dim 0 : vector<32x128xf32>, i32 -> vector<32x128xf32>
    %224 = vector.broadcast %154 : vector<32x1xf32> to vector<32x128xf32>
    %225 = arith.mulf %224, %212 : vector<32x128xf32>
    %226 = vector.broadcast %156 : vector<32x1xf32> to vector<32x128xf32>
    %227 = arith.mulf %226, %223 : vector<32x128xf32>
    %228 = arith.addf %225, %227 : vector<32x128xf32>
    %229 = arith.addf %222, %228 : vector<32x128xf32>
    %cst_57 = arith.constant 1.250000e-01 : f32
    %230 = vector.broadcast %cst_57 : f32 to vector<32x128xf32>
    %231 = arith.mulf %229, %230 : vector<32x128xf32>
    %c2_i32_58 = arith.constant 2 : i32
    %232 = tpu.dynamic_rotate %213 by %c2_i32_58 dim 1 : vector<32x128xf32>, i32 -> vector<32x128xf32>
    %233 = vector.broadcast %160 : vector<1x128xf32> to vector<32x128xf32>
    %234 = arith.mulf %233, %213 : vector<32x128xf32>
    %235 = vector.broadcast %162 : vector<1x128xf32> to vector<32x128xf32>
    %236 = arith.mulf %235, %232 : vector<32x128xf32>
    %237 = arith.addf %234, %236 : vector<32x128xf32>
    %cst_59 = arith.constant 2.000000e+00 : f32
    %238 = vector.broadcast %cst_59 : f32 to vector<32x128xf32>
    %239 = arith.mulf %238, %213 : vector<32x128xf32>
    %240 = arith.addf %237, %239 : vector<32x128xf32>
    %c126_i32_60 = arith.constant 126 : i32
    %241 = tpu.dynamic_rotate %213 by %c126_i32_60 dim 1 : vector<32x128xf32>, i32 -> vector<32x128xf32>
    %242 = vector.broadcast %166 : vector<1x128xf32> to vector<32x128xf32>
    %243 = arith.mulf %242, %213 : vector<32x128xf32>
    %244 = vector.broadcast %168 : vector<1x128xf32> to vector<32x128xf32>
    %245 = arith.mulf %244, %241 : vector<32x128xf32>
    %246 = arith.addf %243, %245 : vector<32x128xf32>
    %247 = arith.addf %240, %246 : vector<32x128xf32>
    %cst_61 = arith.constant 1.250000e-01 : f32
    %248 = vector.broadcast %cst_61 : f32 to vector<32x128xf32>
    %249 = arith.mulf %247, %248 : vector<32x128xf32>
    %250 = math.absf %231 : vector<32x128xf32>
    %251 = math.absf %249 : vector<32x128xf32>
    %252 = arith.addf %250, %251 : vector<32x128xf32>
    %253 = vector.broadcast %177 : vector<32x1xf32> to vector<32x128xf32>
    %254 = arith.mulf %252, %253 : vector<32x128xf32>
    %cst_62 = arith.constant dense<0.000000e+00> : vector<128xf32>
    %255 = vector.multi_reduction <add>, %254, %cst_62 [0] : vector<32x128xf32> to vector<128xf32>
    %256 = vector.shape_cast %255 : vector<128xf32> to vector<1x128xf32>
    %257 = arith.addf %187, %256 : vector<1x128xf32>
    %258 = arith.mulf %257, %186 : vector<1x128xf32>
    %c30_i32_63 = arith.constant 30 : i32
    %259 = tpu.dynamic_rotate %144 by %c30_i32_63 dim 0 : vector<32x128xf32>, i32 -> vector<32x128xf32>
    %260 = arith.addf %144, %259 : vector<32x128xf32>
    %c126_i32_64 = arith.constant 126 : i32
    %261 = tpu.dynamic_rotate %260 by %c126_i32_64 dim 1 : vector<32x128xf32>, i32 -> vector<32x128xf32>
    %262 = arith.addf %260, %261 : vector<32x128xf32>
    %cst_65 = arith.constant 2.500000e-01 : f32
    %263 = vector.broadcast %cst_65 : f32 to vector<32x128xf32>
    %264 = arith.mulf %263, %262 : vector<32x128xf32>
    %c4_i32 = arith.constant 4 : i32
    %265 = vector.broadcast %c4_i32 : i32 to vector<32x1xi32>
    %266 = arith.cmpi slt, %0, %265 : vector<32x1xi32>
    %267 = arith.extui %266 : vector<32x1xi1> to vector<32x1xi32>
    %268 = arith.sitofp %267 : vector<32x1xi32> to vector<32x1xf32>
    %cst_66 = arith.constant 1.000000e+00 : f32
    %269 = vector.broadcast %cst_66 : f32 to vector<32x1xf32>
    %270 = arith.subf %269, %268 : vector<32x1xf32>
    %c28_i32 = arith.constant 28 : i32
    %271 = vector.broadcast %c28_i32 : i32 to vector<32x1xi32>
    %272 = arith.cmpi sge, %0, %271 : vector<32x1xi32>
    %273 = arith.extui %272 : vector<32x1xi1> to vector<32x1xi32>
    %274 = arith.sitofp %273 : vector<32x1xi32> to vector<32x1xf32>
    %cst_67 = arith.constant 1.000000e+00 : f32
    %275 = vector.broadcast %cst_67 : f32 to vector<32x1xf32>
    %276 = arith.subf %275, %274 : vector<32x1xf32>
    %c4_i32_68 = arith.constant 4 : i32
    %277 = vector.broadcast %c4_i32_68 : i32 to vector<1x128xi32>
    %278 = arith.cmpi slt, %1, %277 : vector<1x128xi32>
    %279 = arith.extui %278 : vector<1x128xi1> to vector<1x128xi32>
    %280 = arith.sitofp %279 : vector<1x128xi32> to vector<1x128xf32>
    %cst_69 = arith.constant 1.000000e+00 : f32
    %281 = vector.broadcast %cst_69 : f32 to vector<1x128xf32>
    %282 = arith.subf %281, %280 : vector<1x128xf32>
    %c124_i32 = arith.constant 124 : i32
    %283 = vector.broadcast %c124_i32 : i32 to vector<1x128xi32>
    %284 = arith.cmpi sge, %1, %283 : vector<1x128xi32>
    %285 = arith.extui %284 : vector<1x128xi1> to vector<1x128xi32>
    %286 = arith.sitofp %285 : vector<1x128xi32> to vector<1x128xf32>
    %cst_70 = arith.constant 1.000000e+00 : f32
    %287 = vector.broadcast %cst_70 : f32 to vector<1x128xf32>
    %288 = arith.subf %287, %286 : vector<1x128xf32>
    %c3_i32 = arith.constant 3 : i32
    %289 = vector.broadcast %c3_i32 : i32 to vector<32x1xi32>
    %290 = arith.andi %0, %289 : vector<32x1xi32>
    %c0_i32_71 = arith.constant 0 : i32
    %291 = vector.broadcast %c0_i32_71 : i32 to vector<32x1xi32>
    %292 = arith.cmpi eq, %290, %291 : vector<32x1xi32>
    %c32_i32_72 = arith.constant 32 : i32
    %293 = vector.broadcast %c32_i32_72 : i32 to vector<32x1xi32>
    %294 = arith.cmpi slt, %0, %293 : vector<32x1xi32>
    %295 = arith.andi %292, %294 : vector<32x1xi1>
    %296 = arith.extui %295 : vector<32x1xi1> to vector<32x1xi32>
    %297 = arith.sitofp %296 : vector<32x1xi32> to vector<32x1xf32>
    %c3_i32_73 = arith.constant 3 : i32
    %298 = vector.broadcast %c3_i32_73 : i32 to vector<1x128xi32>
    %299 = arith.andi %1, %298 : vector<1x128xi32>
    %c0_i32_74 = arith.constant 0 : i32
    %300 = vector.broadcast %c0_i32_74 : i32 to vector<1x128xi32>
    %301 = arith.cmpi eq, %299, %300 : vector<1x128xi32>
    %c128_i32_75 = arith.constant 128 : i32
    %302 = vector.broadcast %c128_i32_75 : i32 to vector<1x128xi32>
    %303 = arith.cmpi slt, %1, %302 : vector<1x128xi32>
    %304 = arith.andi %301, %303 : vector<1x128xi1>
    %305 = arith.extui %304 : vector<1x128xi1> to vector<1x128xi32>
    %306 = arith.sitofp %305 : vector<1x128xi32> to vector<1x128xf32>
    %cst_76 = arith.constant 0.000000e+00 : f32
    %307 = vector.broadcast %cst_76 : f32 to vector<1x128xf32>
    %c4_i32_77 = arith.constant 4 : i32
    %308 = tpu.dynamic_rotate %264 by %c4_i32_77 dim 0 : vector<32x128xf32>, i32 -> vector<32x128xf32>
    %309 = vector.broadcast %268 : vector<32x1xf32> to vector<32x128xf32>
    %310 = arith.mulf %309, %264 : vector<32x128xf32>
    %311 = vector.broadcast %270 : vector<32x1xf32> to vector<32x128xf32>
    %312 = arith.mulf %311, %308 : vector<32x128xf32>
    %313 = arith.addf %310, %312 : vector<32x128xf32>
    %c28_i32_78 = arith.constant 28 : i32
    %314 = tpu.dynamic_rotate %264 by %c28_i32_78 dim 0 : vector<32x128xf32>, i32 -> vector<32x128xf32>
    %315 = vector.broadcast %274 : vector<32x1xf32> to vector<32x128xf32>
    %316 = arith.mulf %315, %264 : vector<32x128xf32>
    %317 = vector.broadcast %276 : vector<32x1xf32> to vector<32x128xf32>
    %318 = arith.mulf %317, %314 : vector<32x128xf32>
    %319 = arith.addf %316, %318 : vector<32x128xf32>
    %c4_i32_79 = arith.constant 4 : i32
    %320 = tpu.dynamic_rotate %264 by %c4_i32_79 dim 1 : vector<32x128xf32>, i32 -> vector<32x128xf32>
    %321 = vector.broadcast %280 : vector<1x128xf32> to vector<32x128xf32>
    %322 = arith.mulf %321, %264 : vector<32x128xf32>
    %323 = vector.broadcast %282 : vector<1x128xf32> to vector<32x128xf32>
    %324 = arith.mulf %323, %320 : vector<32x128xf32>
    %325 = arith.addf %322, %324 : vector<32x128xf32>
    %c124_i32_80 = arith.constant 124 : i32
    %326 = tpu.dynamic_rotate %264 by %c124_i32_80 dim 1 : vector<32x128xf32>, i32 -> vector<32x128xf32>
    %327 = vector.broadcast %286 : vector<1x128xf32> to vector<32x128xf32>
    %328 = arith.mulf %327, %264 : vector<32x128xf32>
    %329 = vector.broadcast %288 : vector<1x128xf32> to vector<32x128xf32>
    %330 = arith.mulf %329, %326 : vector<32x128xf32>
    %331 = arith.addf %328, %330 : vector<32x128xf32>
    %332 = arith.subf %331, %325 : vector<32x128xf32>
    %333 = arith.subf %319, %313 : vector<32x128xf32>
    %c4_i32_81 = arith.constant 4 : i32
    %334 = tpu.dynamic_rotate %332 by %c4_i32_81 dim 0 : vector<32x128xf32>, i32 -> vector<32x128xf32>
    %335 = vector.broadcast %268 : vector<32x1xf32> to vector<32x128xf32>
    %336 = arith.mulf %335, %332 : vector<32x128xf32>
    %337 = vector.broadcast %270 : vector<32x1xf32> to vector<32x128xf32>
    %338 = arith.mulf %337, %334 : vector<32x128xf32>
    %339 = arith.addf %336, %338 : vector<32x128xf32>
    %cst_82 = arith.constant 2.000000e+00 : f32
    %340 = vector.broadcast %cst_82 : f32 to vector<32x128xf32>
    %341 = arith.mulf %340, %332 : vector<32x128xf32>
    %342 = arith.addf %339, %341 : vector<32x128xf32>
    %c28_i32_83 = arith.constant 28 : i32
    %343 = tpu.dynamic_rotate %332 by %c28_i32_83 dim 0 : vector<32x128xf32>, i32 -> vector<32x128xf32>
    %344 = vector.broadcast %274 : vector<32x1xf32> to vector<32x128xf32>
    %345 = arith.mulf %344, %332 : vector<32x128xf32>
    %346 = vector.broadcast %276 : vector<32x1xf32> to vector<32x128xf32>
    %347 = arith.mulf %346, %343 : vector<32x128xf32>
    %348 = arith.addf %345, %347 : vector<32x128xf32>
    %349 = arith.addf %342, %348 : vector<32x128xf32>
    %cst_84 = arith.constant 1.250000e-01 : f32
    %350 = vector.broadcast %cst_84 : f32 to vector<32x128xf32>
    %351 = arith.mulf %349, %350 : vector<32x128xf32>
    %c4_i32_85 = arith.constant 4 : i32
    %352 = tpu.dynamic_rotate %333 by %c4_i32_85 dim 1 : vector<32x128xf32>, i32 -> vector<32x128xf32>
    %353 = vector.broadcast %280 : vector<1x128xf32> to vector<32x128xf32>
    %354 = arith.mulf %353, %333 : vector<32x128xf32>
    %355 = vector.broadcast %282 : vector<1x128xf32> to vector<32x128xf32>
    %356 = arith.mulf %355, %352 : vector<32x128xf32>
    %357 = arith.addf %354, %356 : vector<32x128xf32>
    %cst_86 = arith.constant 2.000000e+00 : f32
    %358 = vector.broadcast %cst_86 : f32 to vector<32x128xf32>
    %359 = arith.mulf %358, %333 : vector<32x128xf32>
    %360 = arith.addf %357, %359 : vector<32x128xf32>
    %c124_i32_87 = arith.constant 124 : i32
    %361 = tpu.dynamic_rotate %333 by %c124_i32_87 dim 1 : vector<32x128xf32>, i32 -> vector<32x128xf32>
    %362 = vector.broadcast %286 : vector<1x128xf32> to vector<32x128xf32>
    %363 = arith.mulf %362, %333 : vector<32x128xf32>
    %364 = vector.broadcast %288 : vector<1x128xf32> to vector<32x128xf32>
    %365 = arith.mulf %364, %361 : vector<32x128xf32>
    %366 = arith.addf %363, %365 : vector<32x128xf32>
    %367 = arith.addf %360, %366 : vector<32x128xf32>
    %cst_88 = arith.constant 1.250000e-01 : f32
    %368 = vector.broadcast %cst_88 : f32 to vector<32x128xf32>
    %369 = arith.mulf %367, %368 : vector<32x128xf32>
    %370 = math.absf %351 : vector<32x128xf32>
    %371 = math.absf %369 : vector<32x128xf32>
    %372 = arith.addf %370, %371 : vector<32x128xf32>
    %373 = vector.broadcast %297 : vector<32x1xf32> to vector<32x128xf32>
    %374 = arith.mulf %372, %373 : vector<32x128xf32>
    %cst_89 = arith.constant dense<0.000000e+00> : vector<128xf32>
    %375 = vector.multi_reduction <add>, %374, %cst_89 [0] : vector<32x128xf32> to vector<128xf32>
    %376 = vector.shape_cast %375 : vector<128xf32> to vector<1x128xf32>
    %377 = arith.addf %307, %376 : vector<1x128xf32>
    %378 = arith.mulf %377, %306 : vector<1x128xf32>
    %c28_i32_90 = arith.constant 28 : i32
    %379 = tpu.dynamic_rotate %264 by %c28_i32_90 dim 0 : vector<32x128xf32>, i32 -> vector<32x128xf32>
    %380 = arith.addf %264, %379 : vector<32x128xf32>
    %c124_i32_91 = arith.constant 124 : i32
    %381 = tpu.dynamic_rotate %380 by %c124_i32_91 dim 1 : vector<32x128xf32>, i32 -> vector<32x128xf32>
    %382 = arith.addf %380, %381 : vector<32x128xf32>
    %cst_92 = arith.constant 2.500000e-01 : f32
    %383 = vector.broadcast %cst_92 : f32 to vector<32x128xf32>
    %384 = arith.mulf %383, %382 : vector<32x128xf32>
    %c8_i32 = arith.constant 8 : i32
    %385 = vector.broadcast %c8_i32 : i32 to vector<32x1xi32>
    %386 = arith.cmpi slt, %0, %385 : vector<32x1xi32>
    %387 = arith.extui %386 : vector<32x1xi1> to vector<32x1xi32>
    %388 = arith.sitofp %387 : vector<32x1xi32> to vector<32x1xf32>
    %cst_93 = arith.constant 1.000000e+00 : f32
    %389 = vector.broadcast %cst_93 : f32 to vector<32x1xf32>
    %390 = arith.subf %389, %388 : vector<32x1xf32>
    %c24_i32 = arith.constant 24 : i32
    %391 = vector.broadcast %c24_i32 : i32 to vector<32x1xi32>
    %392 = arith.cmpi sge, %0, %391 : vector<32x1xi32>
    %393 = arith.extui %392 : vector<32x1xi1> to vector<32x1xi32>
    %394 = arith.sitofp %393 : vector<32x1xi32> to vector<32x1xf32>
    %cst_94 = arith.constant 1.000000e+00 : f32
    %395 = vector.broadcast %cst_94 : f32 to vector<32x1xf32>
    %396 = arith.subf %395, %394 : vector<32x1xf32>
    %c8_i32_95 = arith.constant 8 : i32
    %397 = vector.broadcast %c8_i32_95 : i32 to vector<1x128xi32>
    %398 = arith.cmpi slt, %1, %397 : vector<1x128xi32>
    %399 = arith.extui %398 : vector<1x128xi1> to vector<1x128xi32>
    %400 = arith.sitofp %399 : vector<1x128xi32> to vector<1x128xf32>
    %cst_96 = arith.constant 1.000000e+00 : f32
    %401 = vector.broadcast %cst_96 : f32 to vector<1x128xf32>
    %402 = arith.subf %401, %400 : vector<1x128xf32>
    %c120_i32 = arith.constant 120 : i32
    %403 = vector.broadcast %c120_i32 : i32 to vector<1x128xi32>
    %404 = arith.cmpi sge, %1, %403 : vector<1x128xi32>
    %405 = arith.extui %404 : vector<1x128xi1> to vector<1x128xi32>
    %406 = arith.sitofp %405 : vector<1x128xi32> to vector<1x128xf32>
    %cst_97 = arith.constant 1.000000e+00 : f32
    %407 = vector.broadcast %cst_97 : f32 to vector<1x128xf32>
    %408 = arith.subf %407, %406 : vector<1x128xf32>
    %c7_i32 = arith.constant 7 : i32
    %409 = vector.broadcast %c7_i32 : i32 to vector<32x1xi32>
    %410 = arith.andi %0, %409 : vector<32x1xi32>
    %c0_i32_98 = arith.constant 0 : i32
    %411 = vector.broadcast %c0_i32_98 : i32 to vector<32x1xi32>
    %412 = arith.cmpi eq, %410, %411 : vector<32x1xi32>
    %c32_i32_99 = arith.constant 32 : i32
    %413 = vector.broadcast %c32_i32_99 : i32 to vector<32x1xi32>
    %414 = arith.cmpi slt, %0, %413 : vector<32x1xi32>
    %415 = arith.andi %412, %414 : vector<32x1xi1>
    %416 = arith.extui %415 : vector<32x1xi1> to vector<32x1xi32>
    %417 = arith.sitofp %416 : vector<32x1xi32> to vector<32x1xf32>
    %c7_i32_100 = arith.constant 7 : i32
    %418 = vector.broadcast %c7_i32_100 : i32 to vector<1x128xi32>
    %419 = arith.andi %1, %418 : vector<1x128xi32>
    %c0_i32_101 = arith.constant 0 : i32
    %420 = vector.broadcast %c0_i32_101 : i32 to vector<1x128xi32>
    %421 = arith.cmpi eq, %419, %420 : vector<1x128xi32>
    %c128_i32_102 = arith.constant 128 : i32
    %422 = vector.broadcast %c128_i32_102 : i32 to vector<1x128xi32>
    %423 = arith.cmpi slt, %1, %422 : vector<1x128xi32>
    %424 = arith.andi %421, %423 : vector<1x128xi1>
    %425 = arith.extui %424 : vector<1x128xi1> to vector<1x128xi32>
    %426 = arith.sitofp %425 : vector<1x128xi32> to vector<1x128xf32>
    %cst_103 = arith.constant 0.000000e+00 : f32
    %427 = vector.broadcast %cst_103 : f32 to vector<1x128xf32>
    %c8_i32_104 = arith.constant 8 : i32
    %428 = tpu.dynamic_rotate %384 by %c8_i32_104 dim 0 : vector<32x128xf32>, i32 -> vector<32x128xf32>
    %429 = vector.broadcast %388 : vector<32x1xf32> to vector<32x128xf32>
    %430 = arith.mulf %429, %384 : vector<32x128xf32>
    %431 = vector.broadcast %390 : vector<32x1xf32> to vector<32x128xf32>
    %432 = arith.mulf %431, %428 : vector<32x128xf32>
    %433 = arith.addf %430, %432 : vector<32x128xf32>
    %c24_i32_105 = arith.constant 24 : i32
    %434 = tpu.dynamic_rotate %384 by %c24_i32_105 dim 0 : vector<32x128xf32>, i32 -> vector<32x128xf32>
    %435 = vector.broadcast %394 : vector<32x1xf32> to vector<32x128xf32>
    %436 = arith.mulf %435, %384 : vector<32x128xf32>
    %437 = vector.broadcast %396 : vector<32x1xf32> to vector<32x128xf32>
    %438 = arith.mulf %437, %434 : vector<32x128xf32>
    %439 = arith.addf %436, %438 : vector<32x128xf32>
    %c8_i32_106 = arith.constant 8 : i32
    %440 = tpu.dynamic_rotate %384 by %c8_i32_106 dim 1 : vector<32x128xf32>, i32 -> vector<32x128xf32>
    %441 = vector.broadcast %400 : vector<1x128xf32> to vector<32x128xf32>
    %442 = arith.mulf %441, %384 : vector<32x128xf32>
    %443 = vector.broadcast %402 : vector<1x128xf32> to vector<32x128xf32>
    %444 = arith.mulf %443, %440 : vector<32x128xf32>
    %445 = arith.addf %442, %444 : vector<32x128xf32>
    %c120_i32_107 = arith.constant 120 : i32
    %446 = tpu.dynamic_rotate %384 by %c120_i32_107 dim 1 : vector<32x128xf32>, i32 -> vector<32x128xf32>
    %447 = vector.broadcast %406 : vector<1x128xf32> to vector<32x128xf32>
    %448 = arith.mulf %447, %384 : vector<32x128xf32>
    %449 = vector.broadcast %408 : vector<1x128xf32> to vector<32x128xf32>
    %450 = arith.mulf %449, %446 : vector<32x128xf32>
    %451 = arith.addf %448, %450 : vector<32x128xf32>
    %452 = arith.subf %451, %445 : vector<32x128xf32>
    %453 = arith.subf %439, %433 : vector<32x128xf32>
    %c8_i32_108 = arith.constant 8 : i32
    %454 = tpu.dynamic_rotate %452 by %c8_i32_108 dim 0 : vector<32x128xf32>, i32 -> vector<32x128xf32>
    %455 = vector.broadcast %388 : vector<32x1xf32> to vector<32x128xf32>
    %456 = arith.mulf %455, %452 : vector<32x128xf32>
    %457 = vector.broadcast %390 : vector<32x1xf32> to vector<32x128xf32>
    %458 = arith.mulf %457, %454 : vector<32x128xf32>
    %459 = arith.addf %456, %458 : vector<32x128xf32>
    %cst_109 = arith.constant 2.000000e+00 : f32
    %460 = vector.broadcast %cst_109 : f32 to vector<32x128xf32>
    %461 = arith.mulf %460, %452 : vector<32x128xf32>
    %462 = arith.addf %459, %461 : vector<32x128xf32>
    %c24_i32_110 = arith.constant 24 : i32
    %463 = tpu.dynamic_rotate %452 by %c24_i32_110 dim 0 : vector<32x128xf32>, i32 -> vector<32x128xf32>
    %464 = vector.broadcast %394 : vector<32x1xf32> to vector<32x128xf32>
    %465 = arith.mulf %464, %452 : vector<32x128xf32>
    %466 = vector.broadcast %396 : vector<32x1xf32> to vector<32x128xf32>
    %467 = arith.mulf %466, %463 : vector<32x128xf32>
    %468 = arith.addf %465, %467 : vector<32x128xf32>
    %469 = arith.addf %462, %468 : vector<32x128xf32>
    %cst_111 = arith.constant 1.250000e-01 : f32
    %470 = vector.broadcast %cst_111 : f32 to vector<32x128xf32>
    %471 = arith.mulf %469, %470 : vector<32x128xf32>
    %c8_i32_112 = arith.constant 8 : i32
    %472 = tpu.dynamic_rotate %453 by %c8_i32_112 dim 1 : vector<32x128xf32>, i32 -> vector<32x128xf32>
    %473 = vector.broadcast %400 : vector<1x128xf32> to vector<32x128xf32>
    %474 = arith.mulf %473, %453 : vector<32x128xf32>
    %475 = vector.broadcast %402 : vector<1x128xf32> to vector<32x128xf32>
    %476 = arith.mulf %475, %472 : vector<32x128xf32>
    %477 = arith.addf %474, %476 : vector<32x128xf32>
    %cst_113 = arith.constant 2.000000e+00 : f32
    %478 = vector.broadcast %cst_113 : f32 to vector<32x128xf32>
    %479 = arith.mulf %478, %453 : vector<32x128xf32>
    %480 = arith.addf %477, %479 : vector<32x128xf32>
    %c120_i32_114 = arith.constant 120 : i32
    %481 = tpu.dynamic_rotate %453 by %c120_i32_114 dim 1 : vector<32x128xf32>, i32 -> vector<32x128xf32>
    %482 = vector.broadcast %406 : vector<1x128xf32> to vector<32x128xf32>
    %483 = arith.mulf %482, %453 : vector<32x128xf32>
    %484 = vector.broadcast %408 : vector<1x128xf32> to vector<32x128xf32>
    %485 = arith.mulf %484, %481 : vector<32x128xf32>
    %486 = arith.addf %483, %485 : vector<32x128xf32>
    %487 = arith.addf %480, %486 : vector<32x128xf32>
    %cst_115 = arith.constant 1.250000e-01 : f32
    %488 = vector.broadcast %cst_115 : f32 to vector<32x128xf32>
    %489 = arith.mulf %487, %488 : vector<32x128xf32>
    %490 = math.absf %471 : vector<32x128xf32>
    %491 = math.absf %489 : vector<32x128xf32>
    %492 = arith.addf %490, %491 : vector<32x128xf32>
    %493 = vector.broadcast %417 : vector<32x1xf32> to vector<32x128xf32>
    %494 = arith.mulf %492, %493 : vector<32x128xf32>
    %cst_116 = arith.constant dense<0.000000e+00> : vector<128xf32>
    %495 = vector.multi_reduction <add>, %494, %cst_116 [0] : vector<32x128xf32> to vector<128xf32>
    %496 = vector.shape_cast %495 : vector<128xf32> to vector<1x128xf32>
    %497 = arith.addf %427, %496 : vector<1x128xf32>
    %498 = arith.mulf %497, %426 : vector<1x128xf32>
    %499 = vector.shape_cast %16 : vector<1x128xf32> to vector<1x1x128xf32>
    %cst_117 = arith.constant dense<0.000000e+00> : vector<1xf32>
    %500 = vector.multi_reduction <add>, %499, %cst_117 [1, 2] : vector<1x1x128xf32> to vector<1xf32>
    %501 = vector.shape_cast %500 : vector<1xf32> to vector<1x1x1xf32>
    %502 = vector.extract %501[0, 0, 0] : f32 from vector<1x1x1xf32>
    %503 = vector.shape_cast %19 : vector<1x128xf32> to vector<1x1x128xf32>
    %cst_118 = arith.constant dense<0.000000e+00> : vector<1xf32>
    %504 = vector.multi_reduction <add>, %503, %cst_118 [1, 2] : vector<1x1x128xf32> to vector<1xf32>
    %505 = vector.shape_cast %504 : vector<1xf32> to vector<1x1x1xf32>
    %506 = vector.extract %505[0, 0, 0] : f32 from vector<1x1x1xf32>
    %507 = vector.shape_cast %23 : vector<1x128xf32> to vector<1x1x128xf32>
    %cst_119 = arith.constant dense<0.000000e+00> : vector<1xf32>
    %508 = vector.multi_reduction <add>, %507, %cst_119 [1, 2] : vector<1x1x128xf32> to vector<1xf32>
    %509 = vector.shape_cast %508 : vector<1xf32> to vector<1x1x1xf32>
    %510 = vector.extract %509[0, 0, 0] : f32 from vector<1x1x1xf32>
    %511 = vector.shape_cast %138 : vector<1x128xf32> to vector<1x1x128xf32>
    %cst_120 = arith.constant dense<0.000000e+00> : vector<1xf32>
    %512 = vector.multi_reduction <add>, %511, %cst_120 [1, 2] : vector<1x1x128xf32> to vector<1xf32>
    %513 = vector.shape_cast %512 : vector<1xf32> to vector<1x1x1xf32>
    %514 = vector.extract %513[0, 0, 0] : f32 from vector<1x1x1xf32>
    %515 = vector.shape_cast %258 : vector<1x128xf32> to vector<1x1x128xf32>
    %cst_121 = arith.constant dense<0.000000e+00> : vector<1xf32>
    %516 = vector.multi_reduction <add>, %515, %cst_121 [1, 2] : vector<1x1x128xf32> to vector<1xf32>
    %517 = vector.shape_cast %516 : vector<1xf32> to vector<1x1x1xf32>
    %518 = vector.extract %517[0, 0, 0] : f32 from vector<1x1x1xf32>
    %519 = vector.shape_cast %378 : vector<1x128xf32> to vector<1x1x128xf32>
    %cst_122 = arith.constant dense<0.000000e+00> : vector<1xf32>
    %520 = vector.multi_reduction <add>, %519, %cst_122 [1, 2] : vector<1x1x128xf32> to vector<1xf32>
    %521 = vector.shape_cast %520 : vector<1xf32> to vector<1x1x1xf32>
    %522 = vector.extract %521[0, 0, 0] : f32 from vector<1x1x1xf32>
    %523 = vector.shape_cast %498 : vector<1x128xf32> to vector<1x1x128xf32>
    %cst_123 = arith.constant dense<0.000000e+00> : vector<1xf32>
    %524 = vector.multi_reduction <add>, %523, %cst_123 [1, 2] : vector<1x1x128xf32> to vector<1xf32>
    %525 = vector.shape_cast %524 : vector<1xf32> to vector<1x1x1xf32>
    %526 = vector.extract %525[0, 0, 0] : f32 from vector<1x1x1xf32>
    %527 = tpu.iota {dimensions = array<i32: 1>} : vector<1x128xi32>
    %cst_124 = arith.constant 0.000000e+00 : f32
    %528 = vector.broadcast %cst_124 : f32 to vector<1x128xf32>
    %c0_i32_125 = arith.constant 0 : i32
    %529 = vector.broadcast %c0_i32_125 : i32 to vector<1x128xi32>
    %530 = arith.cmpi eq, %527, %529 : vector<1x128xi32>
    %531 = vector.broadcast %502 : f32 to vector<1x128xf32>
    %532 = arith.select %530, %531, %528 : vector<1x128xi1>, vector<1x128xf32>
    %c1_i32_126 = arith.constant 1 : i32
    %533 = vector.broadcast %c1_i32_126 : i32 to vector<1x128xi32>
    %534 = arith.cmpi eq, %527, %533 : vector<1x128xi32>
    %535 = vector.broadcast %506 : f32 to vector<1x128xf32>
    %536 = arith.select %534, %535, %532 : vector<1x128xi1>, vector<1x128xf32>
    %c2_i32_127 = arith.constant 2 : i32
    %537 = vector.broadcast %c2_i32_127 : i32 to vector<1x128xi32>
    %538 = arith.cmpi eq, %527, %537 : vector<1x128xi32>
    %539 = vector.broadcast %510 : f32 to vector<1x128xf32>
    %540 = arith.select %538, %539, %536 : vector<1x128xi1>, vector<1x128xf32>
    %c3_i32_128 = arith.constant 3 : i32
    %541 = vector.broadcast %c3_i32_128 : i32 to vector<1x128xi32>
    %542 = arith.cmpi eq, %527, %541 : vector<1x128xi32>
    %543 = vector.broadcast %514 : f32 to vector<1x128xf32>
    %544 = arith.select %542, %543, %540 : vector<1x128xi1>, vector<1x128xf32>
    %c4_i32_129 = arith.constant 4 : i32
    %545 = vector.broadcast %c4_i32_129 : i32 to vector<1x128xi32>
    %546 = arith.cmpi eq, %527, %545 : vector<1x128xi32>
    %547 = vector.broadcast %518 : f32 to vector<1x128xf32>
    %548 = arith.select %546, %547, %544 : vector<1x128xi1>, vector<1x128xf32>
    %c5_i32 = arith.constant 5 : i32
    %549 = vector.broadcast %c5_i32 : i32 to vector<1x128xi32>
    %550 = arith.cmpi eq, %527, %549 : vector<1x128xi32>
    %551 = vector.broadcast %522 : f32 to vector<1x128xf32>
    %552 = arith.select %550, %551, %548 : vector<1x128xi1>, vector<1x128xf32>
    %c6_i32 = arith.constant 6 : i32
    %553 = vector.broadcast %c6_i32 : i32 to vector<1x128xi32>
    %554 = arith.cmpi eq, %527, %553 : vector<1x128xi32>
    %555 = vector.broadcast %526 : f32 to vector<1x128xf32>
    %556 = arith.select %554, %555, %552 : vector<1x128xi1>, vector<1x128xf32>
    %c0_130 = arith.constant 0 : index
    %c0_131 = arith.constant 0 : index
    %c0_132 = arith.constant 0 : index
    %557 = vector.load %arg4[%c0_130, %c0_131, %c0_132] : memref<1x1x128xf32, #tpu.memory_space<vmem>>, vector<1x1x128xf32>
    %558 = vector.shape_cast %557 : vector<1x1x128xf32> to vector<1x128xf32>
    %559 = vector.shape_cast %556 : vector<1x128xf32> to vector<1x1x128xf32>
    tpu.vector_store %arg4[%c0_130, %c0_131, %c0_132], %559 {strides = array<i32>} : memref<1x1x128xf32, #tpu.memory_space<vmem>>, vector<1x1x128xf32>,
    return
  }
  func.func @transform_0(%arg0: i32) -> (i32, i32, i32) {
    %c0_i32 = arith.constant 0 : i32
    %c0_i32_0 = arith.constant 0 : i32
    %c0_i32_1 = arith.constant 0 : i32
    return %arg0, %c0_i32, %c0_i32_0 : i32, i32, i32
  }
  func.func @transform_1(%arg0: i32) -> (i32, i32, i32) {
    %c0_i32 = arith.constant 0 : i32
    %c0_i32_0 = arith.constant 0 : i32
    %c0_i32_1 = arith.constant 0 : i32
    return %arg0, %c0_i32, %c0_i32_0 : i32, i32, i32
  }
  func.func @transform_2(%arg0: i32) -> (i32, i32, i32) {
    %c0_i32 = arith.constant 0 : i32
    %c0_i32_0 = arith.constant 0 : i32
    %c0_i32_1 = arith.constant 0 : i32
    return %arg0, %c0_i32, %c0_i32_0 : i32, i32, i32
  }
  func.func @transform_3(%arg0: i32) -> (i32, i32, i32) {
    %c0_i32 = arith.constant 0 : i32
    %c0_i32_0 = arith.constant 0 : i32
    %c0_i32_1 = arith.constant 0 : i32
    return %arg0, %c0_i32, %c0_i32_0 : i32, i32, i32
  }
}

</mosaic_0001>

<llo_original>
// kernel: mixed_loss.1
$region0: #{mixed_loss.1}
  #allocation0 [shape = 'u32[]', space=smem, size = 0x4, offset = 0x4, fixed_abs, tag = 'smem constant byte address 0x4 - core index']
  #allocation1 [shape = 'u32[144,128]{1,0:T(1,128)}', space=vmem, size = 0x12000, scoped, tag = 'internal scratch']
  %s0 = inlined_call_operand.hbm [shape: f32[2,32,128], index: 0, kind: input, shape index: {}]
  %s1 = inlined_call_operand.hbm [shape: f32[2,32,128], index: 1, kind: input, shape index: {}]
  %s2 = inlined_call_operand.vmem [shape: s8[2,32,128], index: 2, kind: input, shape index: {}]
  %s3 = inlined_call_operand.vmem [shape: f32[2,1,128], index: 3, kind: output, shape index: {}]
  %s4 = sld [smem:[#allocation0]]
  $region53: #{mixed_loss.1} parent=0
    _
  %s6 = ssub.s32 1, %s4
  %s7 = scalar_select 0, %s6, %s4
  $region1: #{mixed_loss.1} parent=0
    #allocation2 [shape = 'u8[32768]{0}', space=vmem, size = 0x8000, scoped, tag = 'input window, operand 0']
    #allocation3 [shape = 's32[2]{0}', space=sflag, size = 0x8, scoped, tag = 'scoped memory for mixed_loss.1']
    #allocation4 [shape = 'u8[32768]{0}', space=vmem, size = 0x8000, scoped, tag = 'input window, operand 1']
    #allocation5 [shape = 's32[2]{0}', space=sflag, size = 0x8, scoped, tag = 'scoped memory for mixed_loss.1']
    %8 = vsyncpa [#allocation3], 0
    %s9 = scalar_lea.sflag [#allocation3], 1
    %10 = vsyncpa %s9, 0
    %11 = vsyncpa [#allocation5], 0
    %s12 = scalar_lea.sflag [#allocation5], 1
    %13 = vsyncpa %s12, 0
    loop: start=0, step=1, limit=4
    $region2: #{mixed_loss.1} parent=1 // loop_pre_header
      _
    $region3: #{mixed_loss.1} parent=1 // loop_header
      %s15 = sphi 0, %s19
      %p16 = scmp.ge.s32.totalorder %s15, 4
      %s25 = sphi 0, %s27
      %s28 = sphi 0, %s25
      %s29 = sphi 0, %s28
      %s45 = sphi 0, %s29
      %s51 = sphi 0, %s53
      %s54 = sphi 0, %s51
      %s55 = sphi 0, %s54
      %s71 = sphi 0, %s55
      %s77 = sphi 0, %s79
      %s80 = sphi 0, %s77
      %s81 = sphi 0, %s80
      %s97 = sphi 0, %s81
      %s103 = sphi 0, %s105
      %s106 = sphi 0, %s103
      %s107 = sphi 0, %s106
      %s123 = sphi 0, %s107
    $region4: #{mixed_loss.1} parent=1 // loop_header_branch
      %18 = sbr.rel (%p16) target = $region8
    $region5: #{mixed_loss.1} parent=1 // loop_body
      %s20 = ssub.s32 %s15, 1
      %s21 = ssub.s32 %s15, 2
      %s22 = sadd.s32 %s15, 1
      %s23 = ssub.s32 %s15, %s22
      %p24 = scmp.eq.s32.totalorder %s23, 0
      %s26 = sadd.s32 %s25, 1
      %s27 = scalar_select %p24, %s25, %s26
      %p30 = pneg %p24
      %p31 = scmp.eq.s32.totalorder %s15, 1
      %p32 = por %p30, %p31
      %p33 = scmp.ne.s32.totalorder %s25, %s28
      %p34 = scmp.eq.s32.totalorder %s15, 0
      %p35 = por %p33, %p34
      %p36 = scmp.ne.s32.totalorder %s25, %s28
      %p37 = scmp.eq.s32.totalorder %s20, 1
      %p38 = por %p36, %p37
      %p39 = scmp.ne.s32.totalorder %s28, %s29
      %p40 = scmp.eq.s32.totalorder %s20, 0
      %p41 = por %p39, %p40
      %p42 = scmp.ne.s32.totalorder %s28, %s29
      %p43 = scmp.eq.s32.totalorder %s21, 1
      %p44 = por %p42, %p43
      %p46 = scmp.ne.s32.totalorder %s29, %s45
      %p47 = scmp.eq.s32.totalorder %s21, 0
      %p48 = por %p46, %p47
      %s49 = ssub.s32 %s15, %s22
      %p50 = scmp.eq.s32.totalorder %s49, 0
      %s52 = sadd.s32 %s51, 1
      %s53 = scalar_select %p50, %s51, %s52
      %p56 = pneg %p50
      %p57 = scmp.eq.s32.totalorder %s15, 1
      %p58 = por %p56, %p57
      %p59 = scmp.ne.s32.totalorder %s51, %s54
      %p60 = scmp.eq.s32.totalorder %s15, 0
      %p61 = por %p59, %p60
      %p62 = scmp.ne.s32.totalorder %s51, %s54
      %p63 = scmp.eq.s32.totalorder %s20, 1
      %p64 = por %p62, %p63
      %p65 = scmp.ne.s32.totalorder %s54, %s55
      %p66 = scmp.eq.s32.totalorder %s20, 0
      %p67 = por %p65, %p66
      %p68 = scmp.ne.s32.totalorder %s54, %s55
      %p69 = scmp.eq.s32.totalorder %s21, 1
      %p70 = por %p68, %p69
      %p72 = scmp.ne.s32.totalorder %s55, %s71
      %p73 = scmp.eq.s32.totalorder %s21, 0
      %p74 = por %p72, %p73
      %s75 = ssub.s32 %s15, %s22
      %p76 = scmp.eq.s32.totalorder %s75, 0
      %s78 = sadd.s32 %s77, 1
      %s79 = scalar_select %p76, %s77, %s78
      %p82 = pneg %p76
      %p83 = scmp.eq.s32.totalorder %s15, 1
      %p84 = por %p82, %p83
      %p85 = scmp.ne.s32.totalorder %s77, %s80
      %p86 = scmp.eq.s32.totalorder %s15, 0
      %p87 = por %p85, %p86
      %p88 = scmp.ne.s32.totalorder %s77, %s80
      %p89 = scmp.eq.s32.totalorder %s20, 1
      %p90 = por %p88, %p89
      %p91 = scmp.ne.s32.totalorder %s80, %s81
      %p92 = scmp.eq.s32.totalorder %s20, 0
      %p93 = por %p91, %p92
      %p94 = scmp.ne.s32.totalorder %s80, %s81
      %p95 = scmp.eq.s32.totalorder %s21, 1
      %p96 = por %p94, %p95
      %p98 = scmp.ne.s32.totalorder %s81, %s97
      %p99 = scmp.eq.s32.totalorder %s21, 0
      %p100 = por %p98, %p99
      %s101 = ssub.s32 %s15, %s22
      %p102 = scmp.eq.s32.totalorder %s101, 0
      %s104 = sadd.s32 %s103, 1
      %s105 = scalar_select %p102, %s103, %s104
      %p108 = pneg %p102
      %p109 = scmp.eq.s32.totalorder %s15, 1
      %p110 = por %p108, %p109
      %p111 = scmp.ne.s32.totalorder %s103, %s106
      %p112 = scmp.eq.s32.totalorder %s15, 0
      %p113 = por %p111, %p112
      %p114 = scmp.ne.s32.totalorder %s103, %s106
      %p115 = scmp.eq.s32.totalorder %s20, 1
      %p116 = por %p114, %p115
      %p117 = scmp.ne.s32.totalorder %s106, %s107
      %p118 = scmp.eq.s32.totalorder %s20, 0
      %p119 = por %p117, %p118
      %p120 = scmp.ne.s32.totalorder %s106, %s107
      %p121 = scmp.eq.s32.totalorder %s21, 1
      %p122 = por %p120, %p121
      %p124 = scmp.ne.s32.totalorder %s107, %s123
      %p125 = scmp.eq.s32.totalorder %s21, 0
      %p126 = por %p124, %p125
      %p127 = scmp.le.s32.totalorder 1, %s15
      %p128 = scmp.lt.s32.totalorder %s15, 3
      %p129 = pnand %p127, %p128
      %p130 = pneg %p129
      // Predicated region
      $region9: #{mixed_loss.1} parent=5 // pred_check
        _
      $region10: #{mixed_loss.1} parent=5 // pred_check_branch
        %132 = sbr.rel (%p129) target = $region12
      $region11: #{mixed_loss.1} parent=5 // pred_region
        %s133 = ssub.s32 %s15, 1
      $region12: #{mixed_loss.1} parent=5 // pred_fallthru
        _
      %p134 = scmp.lt.s32.totalorder %s15, 2
      // Predicated region
      $region13: #{mixed_loss.1} parent=5 // pred_check
        %p135 = pneg %p134
      $region14: #{mixed_loss.1} parent=5 // pred_check_branch
        %137 = sbr.rel (%p135) target = $region16
      $region15: #{mixed_loss.1} parent=5 // pred_region
        // Predicated region
        $region17: #{mixed_loss.1} parent=15 // pred_check
          %p138 = pneg %p35
        $region18: #{mixed_loss.1} parent=15 // pred_check_branch
          %140 = sbr.rel (%p138) target = $region20
        $region19: #{mixed_loss.1} parent=15 // pred_region
          %s141 = sand.u32 %s25, 1
          %s142 = scalar_lea.sflag [#allocation3], %s141
          %s143 = sand.u32 %s25, 1
          %s144 = smul.addr %s143, 32
          %s145 = scalar_lea.vmem [#allocation2], %s144
          %s147 = ssub.s32 512, 512
          %148 = vsyncadd %s142, %s147
          %s149 = smul.addr %s15, 4
          %s150 = smul.addr %s149, 128
          %s151 = scalar_lea.hbm %s0, %s150
          %s152 = sshll.u32 %s145, 4
          %s153 = int_to_ptr.vmem [resolvable:$true] %s152
          %158 = dma.hbm_to_vmem [thread:$0]  %s151, 512, %s153, %s142, 128, 128, 8
        $region20: #{mixed_loss.1} parent=15 // pred_fallthru
          _
        // Predicated region
        $region21: #{mixed_loss.1} parent=15 // pred_check
          %p159 = pneg %p61
        $region22: #{mixed_loss.1} parent=15 // pred_check_branch
          %161 = sbr.rel (%p159) target = $region24
        $region23: #{mixed_loss.1} parent=15 // pred_region
          %s162 = sand.u32 %s51, 1
          %s163 = scalar_lea.sflag [#allocation5], %s162
          %s164 = sand.u32 %s51, 1
          %s165 = smul.addr %s164, 32
          %s166 = scalar_lea.vmem [#allocation4], %s165
          %s168 = ssub.s32 512, 512
          %169 = vsyncadd %s163, %s168
          %s170 = smul.addr %s15, 4
          %s171 = smul.addr %s170, 128
          %s172 = scalar_lea.hbm %s1, %s171
          %s173 = sshll.u32 %s166, 4
          %s174 = int_to_ptr.vmem [resolvable:$true] %s173
          %179 = dma.hbm_to_vmem [thread:$0]  %s172, 512, %s174, %s163, 128, 128, 8
        $region24: #{mixed_loss.1} parent=15 // pred_fallthru
          _
        // Predicated region
        $region25: #{mixed_loss.1} parent=15 // pred_check
          %p180 = pneg %p87
        $region26: #{mixed_loss.1} parent=15 // pred_check_branch
          %182 = sbr.rel (%p180) target = $region28
        $region27: #{mixed_loss.1} parent=15 // pred_region
          %p183 = scmp.lt.s32.totalorder %s15, 1
          %s184 = scalar_select %p183, %s15, 1
          %s185 = smul.addr %s184, 8
          %s186 = scalar_lea.vmem %s2, %s185
        $region28: #{mixed_loss.1} parent=15 // pred_fallthru
          _
      $region16: #{mixed_loss.1} parent=5 // pred_fallthru
        _
      %p187 = scmp.le.s32.totalorder 1, %s15
      %p188 = scmp.lt.s32.totalorder %s15, 3
      %p189 = pnand %p187, %p188
      %p190 = pneg %p189
      // Predicated region
      $region29: #{mixed_loss.1} parent=5 // pred_check
        _
      $region30: #{mixed_loss.1} parent=5 // pred_check_branch
        %192 = sbr.rel (%p189) target = $region32
      $region31: #{mixed_loss.1} parent=5 // pred_region
        %s193 = ssub.s32 %s15, 1
        %s194 = sand.u32 %s28, 1
        %s195 = scalar_lea.sflag [#allocation3], %s194
        %s196 = sand.u32 %s28, 1
        %s197 = smul.addr %s196, 32
        %s198 = scalar_lea.vmem [#allocation2], %s197
        // Predicated region
        $region33: #{mixed_loss.1} parent=31 // pred_check
          %p199 = pneg %p41
        $region34: #{mixed_loss.1} parent=31 // pred_check_branch
          %201 = sbr.rel (%p199) target = $region36
        $region35: #{mixed_loss.1} parent=31 // pred_region
          %202 = dma.done %s195, 512
        $region36: #{mixed_loss.1} parent=31 // pred_fallthru
          _
        %s203 = sand.u32 %s54, 1
        %s204 = scalar_lea.sflag [#allocation5], %s203
        %s205 = sand.u32 %s54, 1
        %s206 = smul.addr %s205, 32
        %s207 = scalar_lea.vmem [#allocation4], %s206
        // Predicated region
        $region37: #{mixed_loss.1} parent=31 // pred_check
          %p208 = pneg %p67
        $region38: #{mixed_loss.1} parent=31 // pred_check_branch
          %210 = sbr.rel (%p208) target = $region40
        $region39: #{mixed_loss.1} parent=31 // pred_region
          %211 = dma.done %s204, 512
        $region40: #{mixed_loss.1} parent=31 // pred_fallthru
          _
        %s212 = sand.u32 %s28, 1
        %s213 = scalar_lea.sflag [#allocation3], %s212
        %s214 = sand.u32 %s28, 1
        %s215 = smul.addr %s214, 32
        %s216 = scalar_lea.vmem [#allocation2], %s215
        %p217 = pneg %p41
        %p218 = pneg %p38
        %s219 = sand.u32 %s54, 1
        %s220 = scalar_lea.sflag [#allocation5], %s219
        %s221 = sand.u32 %s54, 1
        %s222 = smul.addr %s221, 32
        %s223 = scalar_lea.vmem [#allocation4], %s222
        %p224 = pneg %p67
        %p225 = pneg %p64
        %p226 = scmp.lt.s32.totalorder %s20, 1
        %s227 = scalar_select %p226, %s20, 1
        %s228 = smul.addr %s227, 8
        %s229 = scalar_lea.vmem %s2, %s228
        %p230 = pneg %p93
        %p231 = pneg %p90
        %p232 = pneg %p119
        %p233 = pneg %p116
        %p234 = scmp.lt.s32.totalorder %s20, 1
        %s235 = scalar_select %p234, %s20, 1
        %s236 = scalar_lea.vmem %s3, %s235
        %p237 = scmp.lt.s32.totalorder %s20, 1
        %s238 = scalar_select %p237, %s20, 1
        %s239 = smul.addr %s238, 8
        %s240 = scalar_lea.vmem %s2, %s239
        %p241 = scmp.lt.s32.totalorder %s20, 1
        %s242 = scalar_select %p241, %s20, 1
        %s243 = scalar_lea.vmem %s3, %s242
        %v244 = vlaneseq
        %v245 = vshrl.u32 %v244, 7
        %v246 = vadd.s32 %v245, 8
        %v247 = vadd.s32 %v245, 16
        %v248 = vadd.s32 %v245, 24
        %v249 = vlaneseq
        %v250 = vand.u32 %v249, 127
        %v251 = vld [vmem:[%s198] sm:$0xff]
        %v252 = vld [vmem:[%s198 + $0x8] sm:$0xff]
        %v253 = vld [vmem:[%s198 + $0x10] sm:$0xff]
        %v254 = vld [vmem:[%s198 + $0x18] sm:$0xff]
        %v255 = vld [vmem:[%s207] sm:$0xff]
        %v256 = vld [vmem:[%s207 + $0x8] sm:$0xff]
        %v257 = vld [vmem:[%s207 + $0x10] sm:$0xff]
        %v258 = vld [vmem:[%s207 + $0x18] sm:$0xff]
        %v259 = vld [vmem:[%s240] sm:$0xff]
        %v260 = vunpack.c.0.s8 %v259
        %v261 = vunpack.c.1.s8 %v259
        %v262 = vunpack.c.2.s8 %v259
        %v263 = vunpack.c.3.s8 %v259
        %v264 = vcvt.s32.f32 %v260
        %v265 = vcvt.s32.f32 %v261
        %v266 = vcvt.s32.f32 %v262
        %v267 = vcvt.s32.f32 %v263
        %v268 = vsub.f32 %v255, %v251
        %v269 = vsub.f32 %v256, %v252
        %v270 = vsub.f32 %v257, %v253
        %v271 = vsub.f32 %v258, %v254
        %v272 = vmul.f32 %v268, %v264
        %v273 = vmul.f32 %v269, %v265
        %v274 = vmul.f32 %v270, %v266
        %v275 = vmul.f32 %v271, %v267
        %v276 = vadd.f32 %v264, %v265
        %v277 = vadd.f32 %v276, %v266
        %v278 = vadd.f32 %v277, %v267
        %v279 = vrot.slane %v278, 4
        %v280 = vadd.f32 %v278, %v279
        %v281 = vrot.slane %v280, 2
        %v282 = vadd.f32 %v280, %v281
        %v283 = vrot.slane %v282, 1
        %v284 = vadd.f32 %v282, %v283
        %v285 = vadd.f32 %v284, 0.0
        %v286 = vadd.f32 %v272, %v273
        %v287 = vadd.f32 %v286, %v274
        %v288 = vadd.f32 %v287, %v275
        %v289 = vrot.slane %v288, 4
        %v290 = vadd.f32 %v288, %v289
        %v291 = vrot.slane %v290, 2
        %v292 = vadd.f32 %v290, %v291
        %v293 = vrot.slane %v292, 1
        %v294 = vadd.f32 %v292, %v293
        %v295 = vadd.f32 %v294, 0.0
        %v296 = vmul.f32 %v272, %v272
        %v297 = vmul.f32 %v273, %v273
        %v298 = vmul.f32 %v274, %v274
        %v299 = vmul.f32 %v275, %v275
        %v300 = vadd.f32 %v296, %v297
        %v301 = vadd.f32 %v300, %v298
        %v302 = vadd.f32 %v301, %v299
        %v303 = vrot.slane %v302, 4
        %v304 = vadd.f32 %v302, %v303
        %v305 = vrot.slane %v304, 2
        %v306 = vadd.f32 %v304, %v305
        %v307 = vrot.slane %v306, 1
        %v308 = vadd.f32 %v306, %v307
        %v309 = vadd.f32 %v308, 0.0
        %v310 = vsub.f32 %v251, %v255
        %v311 = vsub.f32 %v252, %v256
        %v312 = vsub.f32 %v253, %v257
        %v313 = vsub.f32 %v254, %v258
        %vm314 = vcmp.lt.s32.totalorder %v245, 1
        %vm315 = vcmp.lt.s32.totalorder %v246, 1
        %vm316 = vcmp.lt.s32.totalorder %v247, 1
        %vm317 = vcmp.lt.s32.totalorder %v248, 1
        %v318 = vsel %vm314, 1, 0
        %v319 = vsel %vm315, 1, 0
        %v320 = vsel %vm316, 1, 0
        %v321 = vsel %vm317, 1, 0
        %v322 = vcvt.s32.f32 %v318
        %v323 = vcvt.s32.f32 %v319
        %v324 = vcvt.s32.f32 %v320
        %v325 = vcvt.s32.f32 %v321
        %v326 = vsub.f32 1.0, %v322
        %v327 = vsub.f32 1.0, %v323
        %v328 = vsub.f32 1.0, %v324
        %v329 = vsub.f32 1.0, %v325
        %vm330 = vcmp.ge.s32.totalorder %v245, 31
        %vm331 = vcmp.ge.s32.totalorder %v246, 31
        %vm332 = vcmp.ge.s32.totalorder %v247, 31
        %vm333 = vcmp.ge.s32.totalorder %v248, 31
        %v334 = vsel %vm330, 1, 0
        %v335 = vsel %vm331, 1, 0
        %v336 = vsel %vm332, 1, 0
        %v337 = vsel %vm333, 1, 0
        %v338 = vcvt.s32.f32 %v334
        %v339 = vcvt.s32.f32 %v335
        %v340 = vcvt.s32.f32 %v336
        %v341 = vcvt.s32.f32 %v337
        %v342 = vsub.f32 1.0, %v338
        %v343 = vsub.f32 1.0, %v339
        %v344 = vsub.f32 1.0, %v340
        %v345 = vsub.f32 1.0, %v341
        %vm346 = vcmp.lt.s32.totalorder %v250, 1
        %v347 = vsel %vm346, 1, 0
        %v348 = vcvt.s32.f32 %v347
        %v349 = vsub.f32 1.0, %v348
        %vm350 = vcmp.ge.s32.totalorder %v250, 127
        %v351 = vsel %vm350, 1, 0
        %v352 = vcvt.s32.f32 %v351
        %v353 = vsub.f32 1.0, %v352
        %vm354 = vcmp.lt.s32.totalorder %v245, 32
        %vm355 = vcmp.lt.s32.totalorder %v246, 32
        %vm356 = vcmp.lt.s32.totalorder %v247, 32
        %vm357 = vcmp.lt.s32.totalorder %v248, 32
        %v358 = vsel %vm354, 1, 0
        %v359 = vsel %vm355, 1, 0
        %v360 = vsel %vm356, 1, 0
        %v361 = vsel %vm357, 1, 0
        %v362 = vcvt.s32.f32 %v358
        %v363 = vcvt.s32.f32 %v359
        %v364 = vcvt.s32.f32 %v360
        %v365 = vcvt.s32.f32 %v361
        %vm366 = vcmp.lt.s32.totalorder %v250, 128
        %v367 = vsel %vm366, 1, 0
        %v368 = vcvt.s32.f32 %v367
        %v369 = vrot.slane %v310, 7
        %v370 = vrot.slane %v311, 7
        %v371 = vrot.slane %v312, 7
        %v372 = vrot.slane %v313, 7
        %v373 = vsel %vm314, %v371, %v372
        %v374 = vsel %vm314, %v370, %v371
        %v375 = vsel %vm314, %v369, %v370
        %v376 = vsel %vm314, %v372, %v369
        %v377 = vmul.f32 %v322, %v310
        %v378 = vmul.f32 %v323, %v311
        %v379 = vmul.f32 %v324, %v312
        %v380 = vmul.f32 %v325, %v313
        %v381 = vmul.f32 %v326, %v376
        %v382 = vmul.f32 %v327, %v375
        %v383 = vmul.f32 %v328, %v374
        %v384 = vmul.f32 %v329, %v373
        %v385 = vadd.f32 %v377, %v381
        %v386 = vadd.f32 %v378, %v382
        %v387 = vadd.f32 %v379, %v383
        %v388 = vadd.f32 %v380, %v384
        %v389 = vrot.slane %v310, 1
        %v390 = vrot.slane %v311, 1
        %v391 = vrot.slane %v312, 1
        %v392 = vrot.slane %v313, 1
        %vm393 = vcmp.lt.s32.totalorder %v245, 7
        %v394 = vsel %vm393, %v391, %v392
        %v395 = vsel %vm393, %v390, %v391
        %v396 = vsel %vm393, %v389, %v390
        %v397 = vsel %vm393, %v392, %v389
        %v398 = vmul.f32 %v338, %v310
        %v399 = vmul.f32 %v339, %v311
        %v400 = vmul.f32 %v340, %v312
        %v401 = vmul.f32 %v341, %v313
        %v402 = vmul.f32 %v342, %v396
        %v403 = vmul.f32 %v343, %v395
        %v404 = vmul.f32 %v344, %v394
        %v405 = vmul.f32 %v345, %v397
        %v406 = vadd.f32 %v398, %v402
        %v407 = vadd.f32 %v399, %v403
        %v408 = vadd.f32 %v400, %v404
        %v409 = vadd.f32 %v401, %v405
        %410 = vrot.lane.b32.xlu0 %v310, 1
        %v411 = vpop.permute.xlu0 %410
        %412 = vrot.lane.b32.xlu0 %v311, 1
        %v413 = vpop.permute.xlu0 %412
        %414 = vrot.lane.b32.xlu0 %v312, 1
        %v415 = vpop.permute.xlu0 %414
        %416 = vrot.lane.b32.xlu0 %v313, 1
        %v417 = vpop.permute.xlu0 %416
        %v418 = vmul.f32 %v348, %v310
        %v419 = vmul.f32 %v348, %v311
        %v420 = vmul.f32 %v348, %v312
        %v421 = vmul.f32 %v348, %v313
        %v422 = vmul.f32 %v349, %v411
        %v423 = vmul.f32 %v349, %v413
        %v424 = vmul.f32 %v349, %v415
        %v425 = vmul.f32 %v349, %v417
        %v426 = vadd.f32 %v418, %v422
        %v427 = vadd.f32 %v419, %v423
        %v428 = vadd.f32 %v420, %v424
        %v429 = vadd.f32 %v421, %v425
        %430 = vrot.lane.b32.xlu0 %v310, 127
        %v431 = vpop.permute.xlu0 %430
        %432 = vrot.lane.b32.xlu0 %v311, 127
        %v433 = vpop.permute.xlu0 %432
        %434 = vrot.lane.b32.xlu0 %v312, 127
        %v435 = vpop.permute.xlu0 %434
        %436 = vrot.lane.b32.xlu0 %v313, 127
        %v437 = vpop.permute.xlu0 %436
        %v438 = vmul.f32 %v352, %v310
        %v439 = vmul.f32 %v352, %v311
        %v440 = vmul.f32 %v352, %v312
        %v441 = vmul.f32 %v352, %v313
        %v442 = vmul.f32 %v353, %v431
        %v443 = vmul.f32 %v353, %v433
        %v444 = vmul.f32 %v353, %v435
        %v445 = vmul.f32 %v353, %v437
        %v446 = vadd.f32 %v438, %v442
        %v447 = vadd.f32 %v439, %v443
        %v448 = vadd.f32 %v440, %v444
        %v449 = vadd.f32 %v441, %v445
        %v450 = vsub.f32 %v446, %v426
        %v451 = vsub.f32 %v447, %v427
        %v452 = vsub.f32 %v448, %v428
        %v453 = vsub.f32 %v449, %v429
        %v454 = vsub.f32 %v406, %v385
        %v455 = vsub.f32 %v407, %v386
        %v456 = vsub.f32 %v408, %v387
        %v457 = vsub.f32 %v409, %v388
        %v458 = vrot.slane %v450, 7
        %v459 = vrot.slane %v451, 7
        %v460 = vrot.slane %v452, 7
        %v461 = vrot.slane %v453, 7
        %v462 = vsel %vm314, %v460, %v461
        %v463 = vsel %vm314, %v459, %v460
        %v464 = vsel %vm314, %v458, %v459
        %v465 = vsel %vm314, %v461, %v458
        %v466 = vmul.f32 %v322, %v450
        %v467 = vmul.f32 %v323, %v451
        %v468 = vmul.f32 %v324, %v452
        %v469 = vmul.f32 %v325, %v453
        %v470 = vmul.f32 %v326, %v465
        %v471 = vmul.f32 %v327, %v464
        %v472 = vmul.f32 %v328, %v463
        %v473 = vmul.f32 %v329, %v462
        %v474 = vadd.f32 %v466, %v470
        %v475 = vadd.f32 %v467, %v471
        %v476 = vadd.f32 %v468, %v472
        %v477 = vadd.f32 %v469, %v473
        %v478 = vmul.f32 %v450, 2.0
        %v479 = vmul.f32 %v451, 2.0
        %v480 = vmul.f32 %v452, 2.0
        %v481 = vmul.f32 %v453, 2.0
        %v482 = vadd.f32 %v474, %v478
        %v483 = vadd.f32 %v475, %v479
        %v484 = vadd.f32 %v476, %v480
        %v485 = vadd.f32 %v477, %v481
        %v486 = vrot.slane %v450, 1
        %v487 = vrot.slane %v451, 1
        %v488 = vrot.slane %v452, 1
        %v489 = vrot.slane %v453, 1
        %v490 = vsel %vm393, %v488, %v489
        %v491 = vsel %vm393, %v487, %v488
        %v492 = vsel %vm393, %v486, %v487
        %v493 = vsel %vm393, %v489, %v486
        %v494 = vmul.f32 %v338, %v450
        %v495 = vmul.f32 %v339, %v451
        %v496 = vmul.f32 %v340, %v452
        %v497 = vmul.f32 %v341, %v453
        %v498 = vmul.f32 %v342, %v492
        %v499 = vmul.f32 %v343, %v491
        %v500 = vmul.f32 %v344, %v490
        %v501 = vmul.f32 %v345, %v493
        %v502 = vadd.f32 %v494, %v498
        %v503 = vadd.f32 %v495, %v499
        %v504 = vadd.f32 %v496, %v500
        %v505 = vadd.f32 %v497, %v501
        %v506 = vadd.f32 %v482, %v502
        %v507 = vadd.f32 %v483, %v503
        %v508 = vadd.f32 %v484, %v504
        %v509 = vadd.f32 %v485, %v505
        %v510 = vmul.f32 %v506, 0.125
        %v511 = vmul.f32 %v507, 0.125
        %v512 = vmul.f32 %v508, 0.125
        %v513 = vmul.f32 %v509, 0.125
        %514 = vrot.lane.b32.xlu0 %v454, 1
        %v515 = vpop.permute.xlu0 %514
        %516 = vrot.lane.b32.xlu0 %v455, 1
        %v517 = vpop.permute.xlu0 %516
        %518 = vrot.lane.b32.xlu0 %v456, 1
        %v519 = vpop.permute.xlu0 %518
        %520 = vrot.lane.b32.xlu0 %v457, 1
        %v521 = vpop.permute.xlu0 %520
        %v522 = vmul.f32 %v348, %v454
        %v523 = vmul.f32 %v348, %v455
        %v524 = vmul.f32 %v348, %v456
        %v525 = vmul.f32 %v348, %v457
        %v526 = vmul.f32 %v349, %v515
        %v527 = vmul.f32 %v349, %v517
        %v528 = vmul.f32 %v349, %v519
        %v529 = vmul.f32 %v349, %v521
        %v530 = vadd.f32 %v522, %v526
        %v531 = vadd.f32 %v523, %v527
        %v532 = vadd.f32 %v524, %v528
        %v533 = vadd.f32 %v525, %v529
        %v534 = vmul.f32 %v454, 2.0
        %v535 = vmul.f32 %v455, 2.0
        %v536 = vmul.f32 %v456, 2.0
        %v537 = vmul.f32 %v457, 2.0
        %v538 = vadd.f32 %v530, %v534
        %v539 = vadd.f32 %v531, %v535
        %v540 = vadd.f32 %v532, %v536
        %v541 = vadd.f32 %v533, %v537
        %542 = vrot.lane.b32.xlu0 %v454, 127
        %v543 = vpop.permute.xlu0 %542
        %544 = vrot.lane.b32.xlu0 %v455, 127
        %v545 = vpop.permute.xlu0 %544
        %546 = vrot.lane.b32.xlu0 %v456, 127
        %v547 = vpop.permute.xlu0 %546
        %548 = vrot.lane.b32.xlu0 %v457, 127
        %v549 = vpop.permute.xlu0 %548
        %v550 = vmul.f32 %v352, %v454
        %v551 = vmul.f32 %v352, %v455
        %v552 = vmul.f32 %v352, %v456
        %v553 = vmul.f32 %v352, %v457
        %v554 = vmul.f32 %v353, %v543
        %v555 = vmul.f32 %v353, %v545
        %v556 = vmul.f32 %v353, %v547
        %v557 = vmul.f32 %v353, %v549
        %v558 = vadd.f32 %v550, %v554
        %v559 = vadd.f32 %v551, %v555
        %v560 = vadd.f32 %v552, %v556
        %v561 = vadd.f32 %v553, %v557
        %v562 = vadd.f32 %v538, %v558
        %v563 = vadd.f32 %v539, %v559
        %v564 = vadd.f32 %v540, %v560
        %v565 = vadd.f32 %v541, %v561
        %v566 = vmul.f32 %v562, 0.125
        %v567 = vmul.f32 %v563, 0.125
        %v568 = vmul.f32 %v564, 0.125
        %v569 = vmul.f32 %v565, 0.125
        %v570 = vand.u32 2147483647, %v510
        %v571 = vand.u32 2147483647, %v511
        %v572 = vand.u32 2147483647, %v512
        %v573 = vand.u32 2147483647, %v513
        %v574 = vand.u32 2147483647, %v566
        %v575 = vand.u32 2147483647, %v567
        %v576 = vand.u32 2147483647, %v568
        %v577 = vand.u32 2147483647, %v569
        %v578 = vadd.f32 %v570, %v574
        %v579 = vadd.f32 %v571, %v575
        %v580 = vadd.f32 %v572, %v576
        %v581 = vadd.f32 %v573, %v577
        %v582 = vmul.f32 %v578, %v362
        %v583 = vmul.f32 %v579, %v363
        %v584 = vmul.f32 %v580, %v364
        %v585 = vmul.f32 %v581, %v365
        %v586 = vadd.f32 %v582, %v583
        %v587 = vadd.f32 %v586, %v584
        %v588 = vadd.f32 %v587, %v585
        %v589 = vrot.slane %v588, 4
        %v590 = vadd.f32 %v588, %v589
        %v591 = vrot.slane %v590, 2
        %v592 = vadd.f32 %v590, %v591
        %v593 = vrot.slane %v592, 1
        %v594 = vadd.f32 %v592, %v593
        %v595 = vadd.f32 %v594, 0.0
        %v596 = vmul.f32 %v595, %v368
        %v597 = vadd.f32 %v310, %v396
        %v598 = vadd.f32 %v311, %v395
        %v599 = vadd.f32 %v312, %v394
        %v600 = vadd.f32 %v313, %v397
        %601 = vrot.lane.b32.xlu0 %v597, 127
        %v602 = vpop.permute.xlu0 %601
        %603 = vrot.lane.b32.xlu0 %v598, 127
        %v604 = vpop.permute.xlu0 %603
        %605 = vrot.lane.b32.xlu0 %v599, 127
        %v606 = vpop.permute.xlu0 %605
        %607 = vrot.lane.b32.xlu0 %v600, 127
        %v608 = vpop.permute.xlu0 %607
        %v609 = vadd.f32 %v597, %v602
        %v610 = vadd.f32 %v598, %v604
        %v611 = vadd.f32 %v599, %v606
        %v612 = vadd.f32 %v600, %v608
        %v613 = vmul.f32 %v609, 0.25
        %v614 = vmul.f32 %v610, 0.25
        %v615 = vmul.f32 %v611, 0.25
        %v616 = vmul.f32 %v612, 0.25
        %vm617 = vcmp.lt.s32.totalorder %v245, 2
        %vm618 = vcmp.lt.s32.totalorder %v246, 2
        %vm619 = vcmp.lt.s32.totalorder %v247, 2
        %vm620 = vcmp.lt.s32.totalorder %v248, 2
        %v621 = vsel %vm617, 1, 0
        %v622 = vsel %vm618, 1, 0
        %v623 = vsel %vm619, 1, 0
        %v624 = vsel %vm620, 1, 0
        %v625 = vcvt.s32.f32 %v621
        %v626 = vcvt.s32.f32 %v622
        %v627 = vcvt.s32.f32 %v623
        %v628 = vcvt.s32.f32 %v624
        %v629 = vsub.f32 1.0, %v625
        %v630 = vsub.f32 1.0, %v626
        %v631 = vsub.f32 1.0, %v627
        %v632 = vsub.f32 1.0, %v628
        %vm633 = vcmp.ge.s32.totalorder %v245, 30
        %vm634 = vcmp.ge.s32.totalorder %v246, 30
        %vm635 = vcmp.ge.s32.totalorder %v247, 30
        %vm636 = vcmp.ge.s32.totalorder %v248, 30
        %v637 = vsel %vm633, 1, 0
        %v638 = vsel %vm634, 1, 0
        %v639 = vsel %vm635, 1, 0
        %v640 = vsel %vm636, 1, 0
        %v641 = vcvt.s32.f32 %v637
        %v642 = vcvt.s32.f32 %v638
        %v643 = vcvt.s32.f32 %v639
        %v644 = vcvt.s32.f32 %v640
        %v645 = vsub.f32 1.0, %v641
        %v646 = vsub.f32 1.0, %v642
        %v647 = vsub.f32 1.0, %v643
        %v648 = vsub.f32 1.0, %v644
        %vm649 = vcmp.lt.s32.totalorder %v250, 2
        %v650 = vsel %vm649, 1, 0
        %v651 = vcvt.s32.f32 %v650
        %v652 = vsub.f32 1.0, %v651
        %vm653 = vcmp.ge.s32.totalorder %v250, 126
        %v654 = vsel %vm653, 1, 0
        %v655 = vcvt.s32.f32 %v654
        %v656 = vsub.f32 1.0, %v655
        %v657 = vand.u32 %v245, 1
        %v658 = vand.u32 %v246, 1
        %v659 = vand.u32 %v247, 1
        %v660 = vand.u32 %v248, 1
        %vm661 = vcmp.eq.s32.totalorder %v657, 0
        %vm662 = vcmp.eq.s32.totalorder %v658, 0
        %vm663 = vcmp.eq.s32.totalorder %v659, 0
        %vm664 = vcmp.eq.s32.totalorder %v660, 0
        %vm665 = vmand %vm661, %vm354
        %vm666 = vmand %vm662, %vm355
        %vm667 = vmand %vm663, %vm356
        %vm668 = vmand %vm664, %vm357
        %v669 = vsel %vm665, 1, 0
        %v670 = vsel %vm666, 1, 0
        %v671 = vsel %vm667, 1, 0
        %v672 = vsel %vm668, 1, 0
        %v673 = vcvt.s32.f32 %v669
        %v674 = vcvt.s32.f32 %v670
        %v675 = vcvt.s32.f32 %v671
        %v676 = vcvt.s32.f32 %v672
        %v677 = vand.u32 %v250, 1
        %vm678 = vcmp.eq.s32.totalorder %v677, 0
        %vm679 = vmand %vm678, %vm366
        %v680 = vsel %vm679, 1, 0
        %v681 = vcvt.s32.f32 %v680
        %v682 = vrot.slane %v613, 6
        %v683 = vrot.slane %v614, 6
        %v684 = vrot.slane %v615, 6
        %v685 = vrot.slane %v616, 6
        %v686 = vsel %vm617, %v684, %v685
        %v687 = vsel %vm617, %v683, %v684
        %v688 = vsel %vm617, %v682, %v683
        %v689 = vsel %vm617, %v685, %v682
        %v690 = vmul.f32 %v625, %v613
        %v691 = vmul.f32 %v626, %v614
        %v692 = vmul.f32 %v627, %v615
        %v693 = vmul.f32 %v628, %v616
        %v694 = vmul.f32 %v629, %v689
        %v695 = vmul.f32 %v630, %v688
        %v696 = vmul.f32 %v631, %v687
        %v697 = vmul.f32 %v632, %v686
        %v698 = vadd.f32 %v690, %v694
        %v699 = vadd.f32 %v691, %v695
        %v700 = vadd.f32 %v692, %v696
        %v701 = vadd.f32 %v693, %v697
        %v702 = vrot.slane %v613, 2
        %v703 = vrot.slane %v614, 2
        %v704 = vrot.slane %v615, 2
        %v705 = vrot.slane %v616, 2
        %vm706 = vcmp.lt.s32.totalorder %v245, 6
        %v707 = vsel %vm706, %v704, %v705
        %v708 = vsel %vm706, %v703, %v704
        %v709 = vsel %vm706, %v702, %v703
        %v710 = vsel %vm706, %v705, %v702
        %v711 = vmul.f32 %v641, %v613
        %v712 = vmul.f32 %v642, %v614
        %v713 = vmul.f32 %v643, %v615
        %v714 = vmul.f32 %v644, %v616
        %v715 = vmul.f32 %v645, %v709
        %v716 = vmul.f32 %v646, %v708
        %v717 = vmul.f32 %v647, %v707
        %v718 = vmul.f32 %v648, %v710
        %v719 = vadd.f32 %v711, %v715
        %v720 = vadd.f32 %v712, %v716
        %v721 = vadd.f32 %v713, %v717
        %v722 = vadd.f32 %v714, %v718
        %723 = vrot.lane.b32.xlu0 %v613, 2
        %v724 = vpop.permute.xlu0 %723
        %725 = vrot.lane.b32.xlu0 %v614, 2
        %v726 = vpop.permute.xlu0 %725
        %727 = vrot.lane.b32.xlu0 %v615, 2
        %v728 = vpop.permute.xlu0 %727
        %729 = vrot.lane.b32.xlu0 %v616, 2
        %v730 = vpop.permute.xlu0 %729
        %v731 = vmul.f32 %v651, %v613
        %v732 = vmul.f32 %v651, %v614
        %v733 = vmul.f32 %v651, %v615
        %v734 = vmul.f32 %v651, %v616
        %v735 = vmul.f32 %v652, %v724
        %v736 = vmul.f32 %v652, %v726
        %v737 = vmul.f32 %v652, %v728
        %v738 = vmul.f32 %v652, %v730
        %v739 = vadd.f32 %v731, %v735
        %v740 = vadd.f32 %v732, %v736
        %v741 = vadd.f32 %v733, %v737
        %v742 = vadd.f32 %v734, %v738
        %743 = vrot.lane.b32.xlu0 %v613, 126
        %v744 = vpop.permute.xlu0 %743
        %745 = vrot.lane.b32.xlu0 %v614, 126
        %v746 = vpop.permute.xlu0 %745
        %747 = vrot.lane.b32.xlu0 %v615, 126
        %v748 = vpop.permute.xlu0 %747
        %749 = vrot.lane.b32.xlu0 %v616, 126
        %v750 = vpop.permute.xlu0 %749
        %v751 = vmul.f32 %v655, %v613
        %v752 = vmul.f32 %v655, %v614
        %v753 = vmul.f32 %v655, %v615
        %v754 = vmul.f32 %v655, %v616
        %v755 = vmul.f32 %v656, %v744
        %v756 = vmul.f32 %v656, %v746
        %v757 = vmul.f32 %v656, %v748
        %v758 = vmul.f32 %v656, %v750
        %v759 = vadd.f32 %v751, %v755
        %v760 = vadd.f32 %v752, %v756
        %v761 = vadd.f32 %v753, %v757
        %v762 = vadd.f32 %v754, %v758
        %v763 = vsub.f32 %v759, %v739
        %v764 = vsub.f32 %v760, %v740
        %v765 = vsub.f32 %v761, %v741
        %v766 = vsub.f32 %v762, %v742
        %v767 = vsub.f32 %v719, %v698
        %v768 = vsub.f32 %v720, %v699
        %v769 = vsub.f32 %v721, %v700
        %v770 = vsub.f32 %v722, %v701
        %v771 = vrot.slane %v763, 6
        %v772 = vrot.slane %v764, 6
        %v773 = vrot.slane %v765, 6
        %v774 = vrot.slane %v766, 6
        %v775 = vsel %vm617, %v773, %v774
        %v776 = vsel %vm617, %v772, %v773
        %v777 = vsel %vm617, %v771, %v772
        %v778 = vsel %vm617, %v774, %v771
        %v779 = vmul.f32 %v625, %v763
        %v780 = vmul.f32 %v626, %v764
        %v781 = vmul.f32 %v627, %v765
        %v782 = vmul.f32 %v628, %v766
        %v783 = vmul.f32 %v629, %v778
        %v784 = vmul.f32 %v630, %v777
        %v785 = vmul.f32 %v631, %v776
        %v786 = vmul.f32 %v632, %v775
        %v787 = vadd.f32 %v779, %v783
        %v788 = vadd.f32 %v780, %v784
        %v789 = vadd.f32 %v781, %v785
        %v790 = vadd.f32 %v782, %v786
        %v791 = vmul.f32 %v763, 2.0
        %v792 = vmul.f32 %v764, 2.0
        %v793 = vmul.f32 %v765, 2.0
        %v794 = vmul.f32 %v766, 2.0
        %v795 = vadd.f32 %v787, %v791
        %v796 = vadd.f32 %v788, %v792
        %v797 = vadd.f32 %v789, %v793
        %v798 = vadd.f32 %v790, %v794
        %v799 = vrot.slane %v763, 2
        %v800 = vrot.slane %v764, 2
        %v801 = vrot.slane %v765, 2
        %v802 = vrot.slane %v766, 2
        %v803 = vsel %vm706, %v801, %v802
        %v804 = vsel %vm706, %v800, %v801
        %v805 = vsel %vm706, %v799, %v800
        %v806 = vsel %vm706, %v802, %v799
        %v807 = vmul.f32 %v641, %v763
        %v808 = vmul.f32 %v642, %v764
        %v809 = vmul.f32 %v643, %v765
        %v810 = vmul.f32 %v644, %v766
        %v811 = vmul.f32 %v645, %v805
        %v812 = vmul.f32 %v646, %v804
        %v813 = vmul.f32 %v647, %v803
        %v814 = vmul.f32 %v648, %v806
        %v815 = vadd.f32 %v807, %v811
        %v816 = vadd.f32 %v808, %v812
        %v817 = vadd.f32 %v809, %v813
        %v818 = vadd.f32 %v810, %v814
        %v819 = vadd.f32 %v795, %v815
        %v820 = vadd.f32 %v796, %v816
        %v821 = vadd.f32 %v797, %v817
        %v822 = vadd.f32 %v798, %v818
        %v823 = vmul.f32 %v819, 0.125
        %v824 = vmul.f32 %v820, 0.125
        %v825 = vmul.f32 %v821, 0.125
        %v826 = vmul.f32 %v822, 0.125
        %827 = vrot.lane.b32.xlu0 %v767, 2
        %v828 = vpop.permute.xlu0 %827
        %829 = vrot.lane.b32.xlu0 %v768, 2
        %v830 = vpop.permute.xlu0 %829
        %831 = vrot.lane.b32.xlu0 %v769, 2
        %v832 = vpop.permute.xlu0 %831
        %833 = vrot.lane.b32.xlu0 %v770, 2
        %v834 = vpop.permute.xlu0 %833
        %v835 = vmul.f32 %v651, %v767
        %v836 = vmul.f32 %v651, %v768
        %v837 = vmul.f32 %v651, %v769
        %v838 = vmul.f32 %v651, %v770
        %v839 = vmul.f32 %v652, %v828
        %v840 = vmul.f32 %v652, %v830
        %v841 = vmul.f32 %v652, %v832
        %v842 = vmul.f32 %v652, %v834
        %v843 = vadd.f32 %v835, %v839
        %v844 = vadd.f32 %v836, %v840
        %v845 = vadd.f32 %v837, %v841
        %v846 = vadd.f32 %v838, %v842
        %v847 = vmul.f32 %v767, 2.0
        %v848 = vmul.f32 %v768, 2.0
        %v849 = vmul.f32 %v769, 2.0
        %v850 = vmul.f32 %v770, 2.0
        %v851 = vadd.f32 %v843, %v847
        %v852 = vadd.f32 %v844, %v848
        %v853 = vadd.f32 %v845, %v849
        %v854 = vadd.f32 %v846, %v850
        %855 = vrot.lane.b32.xlu0 %v767, 126
        %v856 = vpop.permute.xlu0 %855
        %857 = vrot.lane.b32.xlu0 %v768, 126
        %v858 = vpop.permute.xlu0 %857
        %859 = vrot.lane.b32.xlu0 %v769, 126
        %v860 = vpop.permute.xlu0 %859
        %861 = vrot.lane.b32.xlu0 %v770, 126
        %v862 = vpop.permute.xlu0 %861
        %v863 = vmul.f32 %v655, %v767
        %v864 = vmul.f32 %v655, %v768
        %v865 = vmul.f32 %v655, %v769
        %v866 = vmul.f32 %v655, %v770
        %v867 = vmul.f32 %v656, %v856
        %v868 = vmul.f32 %v656, %v858
        %v869 = vmul.f32 %v656, %v860
        %v870 = vmul.f32 %v656, %v862
        %v871 = vadd.f32 %v863, %v867
        %v872 = vadd.f32 %v864, %v868
        %v873 = vadd.f32 %v865, %v869
        %v874 = vadd.f32 %v866, %v870
        %v875 = vadd.f32 %v851, %v871
        %v876 = vadd.f32 %v852, %v872
        %v877 = vadd.f32 %v853, %v873
        %v878 = vadd.f32 %v854, %v874
        %v879 = vmul.f32 %v875, 0.125
        %v880 = vmul.f32 %v876, 0.125
        %v881 = vmul.f32 %v877, 0.125
        %v882 = vmul.f32 %v878, 0.125
        %v883 = vand.u32 2147483647, %v823
        %v884 = vand.u32 2147483647, %v824
        %v885 = vand.u32 2147483647, %v825
        %v886 = vand.u32 2147483647, %v826
        %v887 = vand.u32 2147483647, %v879
        %v888 = vand.u32 2147483647, %v880
        %v889 = vand.u32 2147483647, %v881
        %v890 = vand.u32 2147483647, %v882
        %v891 = vadd.f32 %v883, %v887
        %v892 = vadd.f32 %v884, %v888
        %v893 = vadd.f32 %v885, %v889
        %v894 = vadd.f32 %v886, %v890
        %v895 = vmul.f32 %v891, %v673
        %v896 = vmul.f32 %v892, %v674
        %v897 = vmul.f32 %v893, %v675
        %v898 = vmul.f32 %v894, %v676
        %v899 = vadd.f32 %v895, %v896
        %v900 = vadd.f32 %v899, %v897
        %v901 = vadd.f32 %v900, %v898
        %v902 = vrot.slane %v901, 4
        %v903 = vadd.f32 %v901, %v902
        %v904 = vrot.slane %v903, 2
        %v905 = vadd.f32 %v903, %v904
        %v906 = vrot.slane %v905, 1
        %v907 = vadd.f32 %v905, %v906
        %v908 = vadd.f32 %v907, 0.0
        %v909 = vmul.f32 %v908, %v681
        %v910 = vadd.f32 %v613, %v709
        %v911 = vadd.f32 %v614, %v708
        %v912 = vadd.f32 %v615, %v707
        %v913 = vadd.f32 %v616, %v710
        %914 = vrot.lane.b32.xlu0 %v910, 126
        %v915 = vpop.permute.xlu0 %914
        %916 = vrot.lane.b32.xlu0 %v911, 126
        %v917 = vpop.permute.xlu0 %916
        %918 = vrot.lane.b32.xlu0 %v912, 126
        %v919 = vpop.permute.xlu0 %918
        %920 = vrot.lane.b32.xlu0 %v913, 126
        %v921 = vpop.permute.xlu0 %920
        %v922 = vadd.f32 %v910, %v915
        %v923 = vadd.f32 %v911, %v917
        %v924 = vadd.f32 %v912, %v919
        %v925 = vadd.f32 %v913, %v921
        %v926 = vmul.f32 %v922, 0.25
        %v927 = vmul.f32 %v923, 0.25
        %v928 = vmul.f32 %v924, 0.25
        %v929 = vmul.f32 %v925, 0.25
        %vm930 = vcmp.lt.s32.totalorder %v245, 4
        %vm931 = vcmp.lt.s32.totalorder %v246, 4
        %vm932 = vcmp.lt.s32.totalorder %v247, 4
        %vm933 = vcmp.lt.s32.totalorder %v248, 4
        %v934 = vsel %vm930, 1, 0
        %v935 = vsel %vm931, 1, 0
        %v936 = vsel %vm932, 1, 0
        %v937 = vsel %vm933, 1, 0
        %v938 = vcvt.s32.f32 %v934
        %v939 = vcvt.s32.f32 %v935
        %v940 = vcvt.s32.f32 %v936
        %v941 = vcvt.s32.f32 %v937
        %v942 = vsub.f32 1.0, %v938
        %v943 = vsub.f32 1.0, %v939
        %v944 = vsub.f32 1.0, %v940
        %v945 = vsub.f32 1.0, %v941
        %vm946 = vcmp.ge.s32.totalorder %v245, 28
        %vm947 = vcmp.ge.s32.totalorder %v246, 28
        %vm948 = vcmp.ge.s32.totalorder %v247, 28
        %vm949 = vcmp.ge.s32.totalorder %v248, 28
        %v950 = vsel %vm946, 1, 0
        %v951 = vsel %vm947, 1, 0
        %v952 = vsel %vm948, 1, 0
        %v953 = vsel %vm949, 1, 0
        %v954 = vcvt.s32.f32 %v950
        %v955 = vcvt.s32.f32 %v951
        %v956 = vcvt.s32.f32 %v952
        %v957 = vcvt.s32.f32 %v953
        %v958 = vsub.f32 1.0, %v954
        %v959 = vsub.f32 1.0, %v955
        %v960 = vsub.f32 1.0, %v956
        %v961 = vsub.f32 1.0, %v957
        %vm962 = vcmp.lt.s32.totalorder %v250, 4
        %v963 = vsel %vm962, 1, 0
        %v964 = vcvt.s32.f32 %v963
        %v965 = vsub.f32 1.0, %v964
        %vm966 = vcmp.ge.s32.totalorder %v250, 124
        %v967 = vsel %vm966, 1, 0
        %v968 = vcvt.s32.f32 %v967
        %v969 = vsub.f32 1.0, %v968
        %v970 = vand.u32 %v245, 3
        %v971 = vand.u32 %v246, 3
        %v972 = vand.u32 %v247, 3
        %v973 = vand.u32 %v248, 3
        %vm974 = vcmp.eq.s32.totalorder %v970, 0
        %vm975 = vcmp.eq.s32.totalorder %v971, 0
        %vm976 = vcmp.eq.s32.totalorder %v972, 0
        %vm977 = vcmp.eq.s32.totalorder %v973, 0
        %vm978 = vmand %vm974, %vm354
        %vm979 = vmand %vm975, %vm355
        %vm980 = vmand %vm976, %vm356
        %vm981 = vmand %vm977, %vm357
        %v982 = vsel %vm978, 1, 0
        %v983 = vsel %vm979, 1, 0
        %v984 = vsel %vm980, 1, 0
        %v985 = vsel %vm981, 1, 0
        %v986 = vcvt.s32.f32 %v982
        %v987 = vcvt.s32.f32 %v983
        %v988 = vcvt.s32.f32 %v984
        %v989 = vcvt.s32.f32 %v985
        %v990 = vand.u32 %v250, 3
        %vm991 = vcmp.eq.s32.totalorder %v990, 0
        %vm992 = vmand %vm991, %vm366
        %v993 = vsel %vm992, 1, 0
        %v994 = vcvt.s32.f32 %v993
        %v995 = vrot.slane %v926, 4
        %v996 = vrot.slane %v927, 4
        %v997 = vrot.slane %v928, 4
        %v998 = vrot.slane %v929, 4
        %v999 = vsel %vm930, %v997, %v998
        %v1000 = vsel %vm930, %v996, %v997
        %v1001 = vsel %vm930, %v995, %v996
        %v1002 = vsel %vm930, %v998, %v995
        %v1003 = vmul.f32 %v938, %v926
        %v1004 = vmul.f32 %v939, %v927
        %v1005 = vmul.f32 %v940, %v928
        %v1006 = vmul.f32 %v941, %v929
        %v1007 = vmul.f32 %v942, %v1002
        %v1008 = vmul.f32 %v943, %v1001
        %v1009 = vmul.f32 %v944, %v1000
        %v1010 = vmul.f32 %v945, %v999
        %v1011 = vadd.f32 %v1003, %v1007
        %v1012 = vadd.f32 %v1004, %v1008
        %v1013 = vadd.f32 %v1005, %v1009
        %v1014 = vadd.f32 %v1006, %v1010
        %v1015 = vmul.f32 %v954, %v926
        %v1016 = vmul.f32 %v955, %v927
        %v1017 = vmul.f32 %v956, %v928
        %v1018 = vmul.f32 %v957, %v929
        %v1019 = vmul.f32 %v958, %v1001
        %v1020 = vmul.f32 %v959, %v1000
        %v1021 = vmul.f32 %v960, %v999
        %v1022 = vmul.f32 %v961, %v1002
        %v1023 = vadd.f32 %v1015, %v1019
        %v1024 = vadd.f32 %v1016, %v1020
        %v1025 = vadd.f32 %v1017, %v1021
        %v1026 = vadd.f32 %v1018, %v1022
        %1027 = vrot.lane.b32.xlu0 %v926, 4
        %v1028 = vpop.permute.xlu0 %1027
        %1029 = vrot.lane.b32.xlu0 %v927, 4
        %v1030 = vpop.permute.xlu0 %1029
        %1031 = vrot.lane.b32.xlu0 %v928, 4
        %v1032 = vpop.permute.xlu0 %1031
        %1033 = vrot.lane.b32.xlu0 %v929, 4
        %v1034 = vpop.permute.xlu0 %1033
        %v1035 = vmul.f32 %v964, %v926
        %v1036 = vmul.f32 %v964, %v927
        %v1037 = vmul.f32 %v964, %v928
        %v1038 = vmul.f32 %v964, %v929
        %v1039 = vmul.f32 %v965, %v1028
        %v1040 = vmul.f32 %v965, %v1030
        %v1041 = vmul.f32 %v965, %v1032
        %v1042 = vmul.f32 %v965, %v1034
        %v1043 = vadd.f32 %v1035, %v1039
        %v1044 = vadd.f32 %v1036, %v1040
        %v1045 = vadd.f32 %v1037, %v1041
        %v1046 = vadd.f32 %v1038, %v1042
        %1047 = vrot.lane.b32.xlu0 %v926, 124
        %v1048 = vpop.permute.xlu0 %1047
        %1049 = vrot.lane.b32.xlu0 %v927, 124
        %v1050 = vpop.permute.xlu0 %1049
        %1051 = vrot.lane.b32.xlu0 %v928, 124
        %v1052 = vpop.permute.xlu0 %1051
        %1053 = vrot.lane.b32.xlu0 %v929, 124
        %v1054 = vpop.permute.xlu0 %1053
        %v1055 = vmul.f32 %v968, %v926
        %v1056 = vmul.f32 %v968, %v927
        %v1057 = vmul.f32 %v968, %v928
        %v1058 = vmul.f32 %v968, %v929
        %v1059 = vmul.f32 %v969, %v1048
        %v1060 = vmul.f32 %v969, %v1050
        %v1061 = vmul.f32 %v969, %v1052
        %v1062 = vmul.f32 %v969, %v1054
        %v1063 = vadd.f32 %v1055, %v1059
        %v1064 = vadd.f32 %v1056, %v1060
        %v1065 = vadd.f32 %v1057, %v1061
        %v1066 = vadd.f32 %v1058, %v1062
        %v1067 = vsub.f32 %v1063, %v1043
        %v1068 = vsub.f32 %v1064, %v1044
        %v1069 = vsub.f32 %v1065, %v1045
        %v1070 = vsub.f32 %v1066, %v1046
        %v1071 = vsub.f32 %v1023, %v1011
        %v1072 = vsub.f32 %v1024, %v1012
        %v1073 = vsub.f32 %v1025, %v1013
        %v1074 = vsub.f32 %v1026, %v1014
        %v1075 = vrot.slane %v1067, 4
        %v1076 = vrot.slane %v1068, 4
        %v1077 = vrot.slane %v1069, 4
        %v1078 = vrot.slane %v1070, 4
        %v1079 = vsel %vm930, %v1077, %v1078
        %v1080 = vsel %vm930, %v1076, %v1077
        %v1081 = vsel %vm930, %v1075, %v1076
        %v1082 = vsel %vm930, %v1078, %v1075
        %v1083 = vmul.f32 %v938, %v1067
        %v1084 = vmul.f32 %v939, %v1068
        %v1085 = vmul.f32 %v940, %v1069
        %v1086 = vmul.f32 %v941, %v1070
        %v1087 = vmul.f32 %v942, %v1082
        %v1088 = vmul.f32 %v943, %v1081
        %v1089 = vmul.f32 %v944, %v1080
        %v1090 = vmul.f32 %v945, %v1079
        %v1091 = vadd.f32 %v1083, %v1087
        %v1092 = vadd.f32 %v1084, %v1088
        %v1093 = vadd.f32 %v1085, %v1089
        %v1094 = vadd.f32 %v1086, %v1090
        %v1095 = vmul.f32 %v1067, 2.0
        %v1096 = vmul.f32 %v1068, 2.0
        %v1097 = vmul.f32 %v1069, 2.0
        %v1098 = vmul.f32 %v1070, 2.0
        %v1099 = vadd.f32 %v1091, %v1095
        %v1100 = vadd.f32 %v1092, %v1096
        %v1101 = vadd.f32 %v1093, %v1097
        %v1102 = vadd.f32 %v1094, %v1098
        %v1103 = vmul.f32 %v954, %v1067
        %v1104 = vmul.f32 %v955, %v1068
        %v1105 = vmul.f32 %v956, %v1069
        %v1106 = vmul.f32 %v957, %v1070
        %v1107 = vmul.f32 %v958, %v1081
        %v1108 = vmul.f32 %v959, %v1080
        %v1109 = vmul.f32 %v960, %v1079
        %v1110 = vmul.f32 %v961, %v1082
        %v1111 = vadd.f32 %v1103, %v1107
        %v1112 = vadd.f32 %v1104, %v1108
        %v1113 = vadd.f32 %v1105, %v1109
        %v1114 = vadd.f32 %v1106, %v1110
        %v1115 = vadd.f32 %v1099, %v1111
        %v1116 = vadd.f32 %v1100, %v1112
        %v1117 = vadd.f32 %v1101, %v1113
        %v1118 = vadd.f32 %v1102, %v1114
        %v1119 = vmul.f32 %v1115, 0.125
        %v1120 = vmul.f32 %v1116, 0.125
        %v1121 = vmul.f32 %v1117, 0.125
        %v1122 = vmul.f32 %v1118, 0.125
        %1123 = vrot.lane.b32.xlu0 %v1071, 4
        %v1124 = vpop.permute.xlu0 %1123
        %1125 = vrot.lane.b32.xlu0 %v1072, 4
        %v1126 = vpop.permute.xlu0 %1125
        %1127 = vrot.lane.b32.xlu0 %v1073, 4
        %v1128 = vpop.permute.xlu0 %1127
        %1129 = vrot.lane.b32.xlu0 %v1074, 4
        %v1130 = vpop.permute.xlu0 %1129
        %v1131 = vmul.f32 %v964, %v1071
        %v1132 = vmul.f32 %v964, %v1072
        %v1133 = vmul.f32 %v964, %v1073
        %v1134 = vmul.f32 %v964, %v1074
        %v1135 = vmul.f32 %v965, %v1124
        %v1136 = vmul.f32 %v965, %v1126
        %v1137 = vmul.f32 %v965, %v1128
        %v1138 = vmul.f32 %v965, %v1130
        %v1139 = vadd.f32 %v1131, %v1135
        %v1140 = vadd.f32 %v1132, %v1136
        %v1141 = vadd.f32 %v1133, %v1137
        %v1142 = vadd.f32 %v1134, %v1138
        %v1143 = vmul.f32 %v1071, 2.0
        %v1144 = vmul.f32 %v1072, 2.0
        %v1145 = vmul.f32 %v1073, 2.0
        %v1146 = vmul.f32 %v1074, 2.0
        %v1147 = vadd.f32 %v1139, %v1143
        %v1148 = vadd.f32 %v1140, %v1144
        %v1149 = vadd.f32 %v1141, %v1145
        %v1150 = vadd.f32 %v1142, %v1146
        %1151 = vrot.lane.b32.xlu0 %v1071, 124
        %v1152 = vpop.permute.xlu0 %1151
        %1153 = vrot.lane.b32.xlu0 %v1072, 124
        %v1154 = vpop.permute.xlu0 %1153
        %1155 = vrot.lane.b32.xlu0 %v1073, 124
        %v1156 = vpop.permute.xlu0 %1155
        %1157 = vrot.lane.b32.xlu0 %v1074, 124
        %v1158 = vpop.permute.xlu0 %1157
        %v1159 = vmul.f32 %v968, %v1071
        %v1160 = vmul.f32 %v968, %v1072
        %v1161 = vmul.f32 %v968, %v1073
        %v1162 = vmul.f32 %v968, %v1074
        %v1163 = vmul.f32 %v969, %v1152
        %v1164 = vmul.f32 %v969, %v1154
        %v1165 = vmul.f32 %v969, %v1156
        %v1166 = vmul.f32 %v969, %v1158
        %v1167 = vadd.f32 %v1159, %v1163
        %v1168 = vadd.f32 %v1160, %v1164
        %v1169 = vadd.f32 %v1161, %v1165
        %v1170 = vadd.f32 %v1162, %v1166
        %v1171 = vadd.f32 %v1147, %v1167
        %v1172 = vadd.f32 %v1148, %v1168
        %v1173 = vadd.f32 %v1149, %v1169
        %v1174 = vadd.f32 %v1150, %v1170
        %v1175 = vmul.f32 %v1171, 0.125
        %v1176 = vmul.f32 %v1172, 0.125
        %v1177 = vmul.f32 %v1173, 0.125
        %v1178 = vmul.f32 %v1174, 0.125
        %v1179 = vand.u32 2147483647, %v1119
        %v1180 = vand.u32 2147483647, %v1120
        %v1181 = vand.u32 2147483647, %v1121
        %v1182 = vand.u32 2147483647, %v1122
        %v1183 = vand.u32 2147483647, %v1175
        %v1184 = vand.u32 2147483647, %v1176
        %v1185 = vand.u32 2147483647, %v1177
        %v1186 = vand.u32 2147483647, %v1178
        %v1187 = vadd.f32 %v1179, %v1183
        %v1188 = vadd.f32 %v1180, %v1184
        %v1189 = vadd.f32 %v1181, %v1185
        %v1190 = vadd.f32 %v1182, %v1186
        %v1191 = vmul.f32 %v1187, %v986
        %v1192 = vmul.f32 %v1188, %v987
        %v1193 = vmul.f32 %v1189, %v988
        %v1194 = vmul.f32 %v1190, %v989
        %v1195 = vadd.f32 %v1191, %v1192
        %v1196 = vadd.f32 %v1195, %v1193
        %v1197 = vadd.f32 %v1196, %v1194
        %v1198 = vrot.slane %v1197, 4
        %v1199 = vadd.f32 %v1197, %v1198
        %v1200 = vrot.slane %v1199, 2
        %v1201 = vadd.f32 %v1199, %v1200
        %v1202 = vrot.slane %v1201, 1
        %v1203 = vadd.f32 %v1201, %v1202
        %v1204 = vadd.f32 %v1203, 0.0
        %v1205 = vmul.f32 %v1204, %v994
        %v1206 = vadd.f32 %v926, %v1001
        %v1207 = vadd.f32 %v927, %v1000
        %v1208 = vadd.f32 %v928, %v999
        %v1209 = vadd.f32 %v929, %v1002
        %1210 = vrot.lane.b32.xlu0 %v1206, 124
        %v1211 = vpop.permute.xlu0 %1210
        %1212 = vrot.lane.b32.xlu0 %v1207, 124
        %v1213 = vpop.permute.xlu0 %1212
        %1214 = vrot.lane.b32.xlu0 %v1208, 124
        %v1215 = vpop.permute.xlu0 %1214
        %1216 = vrot.lane.b32.xlu0 %v1209, 124
        %v1217 = vpop.permute.xlu0 %1216
        %v1218 = vadd.f32 %v1206, %v1211
        %v1219 = vadd.f32 %v1207, %v1213
        %v1220 = vadd.f32 %v1208, %v1215
        %v1221 = vadd.f32 %v1209, %v1217
        %v1222 = vmul.f32 %v1218, 0.25
        %v1223 = vmul.f32 %v1219, 0.25
        %v1224 = vmul.f32 %v1220, 0.25
        %v1225 = vmul.f32 %v1221, 0.25
        %vm1226 = vcmp.lt.s32.totalorder %v245, 8
        %vm1227 = vcmp.lt.s32.totalorder %v246, 8
        %vm1228 = vcmp.lt.s32.totalorder %v247, 8
        %vm1229 = vcmp.lt.s32.totalorder %v248, 8
        %v1230 = vsel %vm1226, 1, 0
        %v1231 = vsel %vm1227, 1, 0
        %v1232 = vsel %vm1228, 1, 0
        %v1233 = vsel %vm1229, 1, 0
        %v1234 = vcvt.s32.f32 %v1230
        %v1235 = vcvt.s32.f32 %v1231
        %v1236 = vcvt.s32.f32 %v1232
        %v1237 = vcvt.s32.f32 %v1233
        %v1238 = vsub.f32 1.0, %v1234
        %v1239 = vsub.f32 1.0, %v1235
        %v1240 = vsub.f32 1.0, %v1236
        %v1241 = vsub.f32 1.0, %v1237
        %vm1242 = vcmp.ge.s32.totalorder %v245, 24
        %vm1243 = vcmp.ge.s32.totalorder %v246, 24
        %vm1244 = vcmp.ge.s32.totalorder %v247, 24
        %vm1245 = vcmp.ge.s32.totalorder %v248, 24
        %v1246 = vsel %vm1242, 1, 0
        %v1247 = vsel %vm1243, 1, 0
        %v1248 = vsel %vm1244, 1, 0
        %v1249 = vsel %vm1245, 1, 0
        %v1250 = vcvt.s32.f32 %v1246
        %v1251 = vcvt.s32.f32 %v1247
        %v1252 = vcvt.s32.f32 %v1248
        %v1253 = vcvt.s32.f32 %v1249
        %v1254 = vsub.f32 1.0, %v1250
        %v1255 = vsub.f32 1.0, %v1251
        %v1256 = vsub.f32 1.0, %v1252
        %v1257 = vsub.f32 1.0, %v1253
        %vm1258 = vcmp.lt.s32.totalorder %v250, 8
        %v1259 = vsel %vm1258, 1, 0
        %v1260 = vcvt.s32.f32 %v1259
        %v1261 = vsub.f32 1.0, %v1260
        %vm1262 = vcmp.ge.s32.totalorder %v250, 120
        %v1263 = vsel %vm1262, 1, 0
        %v1264 = vcvt.s32.f32 %v1263
        %v1265 = vsub.f32 1.0, %v1264
        %v1266 = vand.u32 %v245, 7
        %v1267 = vand.u32 %v246, 7
        %v1268 = vand.u32 %v247, 7
        %v1269 = vand.u32 %v248, 7
        %vm1270 = vcmp.eq.s32.totalorder %v1266, 0
        %vm1271 = vcmp.eq.s32.totalorder %v1267, 0
        %vm1272 = vcmp.eq.s32.totalorder %v1268, 0
        %vm1273 = vcmp.eq.s32.totalorder %v1269, 0
        %vm1274 = vmand %vm1270, %vm354
        %vm1275 = vmand %vm1271, %vm355
        %vm1276 = vmand %vm1272, %vm356
        %vm1277 = vmand %vm1273, %vm357
        %v1278 = vsel %vm1274, 1, 0
        %v1279 = vsel %vm1275, 1, 0
        %v1280 = vsel %vm1276, 1, 0
        %v1281 = vsel %vm1277, 1, 0
        %v1282 = vcvt.s32.f32 %v1278
        %v1283 = vcvt.s32.f32 %v1279
        %v1284 = vcvt.s32.f32 %v1280
        %v1285 = vcvt.s32.f32 %v1281
        %v1286 = vand.u32 %v250, 7
        %vm1287 = vcmp.eq.s32.totalorder %v1286, 0
        %vm1288 = vmand %vm1287, %vm366
        %v1289 = vsel %vm1288, 1, 0
        %v1290 = vcvt.s32.f32 %v1289
        %v1291 = vmul.f32 %v1234, %v1222
        %v1292 = vmul.f32 %v1235, %v1223
        %v1293 = vmul.f32 %v1236, %v1224
        %v1294 = vmul.f32 %v1237, %v1225
        %v1295 = vmul.f32 %v1238, %v1225
        %v1296 = vmul.f32 %v1239, %v1222
        %v1297 = vmul.f32 %v1240, %v1223
        %v1298 = vmul.f32 %v1241, %v1224
        %v1299 = vadd.f32 %v1291, %v1295
        %v1300 = vadd.f32 %v1292, %v1296
        %v1301 = vadd.f32 %v1293, %v1297
        %v1302 = vadd.f32 %v1294, %v1298
        %v1303 = vmul.f32 %v1250, %v1222
        %v1304 = vmul.f32 %v1251, %v1223
        %v1305 = vmul.f32 %v1252, %v1224
        %v1306 = vmul.f32 %v1253, %v1225
        %v1307 = vmul.f32 %v1254, %v1223
        %v1308 = vmul.f32 %v1255, %v1224
        %v1309 = vmul.f32 %v1256, %v1225
        %v1310 = vmul.f32 %v1257, %v1222
        %v1311 = vadd.f32 %v1303, %v1307
        %v1312 = vadd.f32 %v1304, %v1308
        %v1313 = vadd.f32 %v1305, %v1309
        %v1314 = vadd.f32 %v1306, %v1310
        %1315 = vrot.lane.b32.xlu0 %v1222, 8
        %v1316 = vpop.permute.xlu0 %1315
        %1317 = vrot.lane.b32.xlu0 %v1223, 8
        %v1318 = vpop.permute.xlu0 %1317
        %1319 = vrot.lane.b32.xlu0 %v1224, 8
        %v1320 = vpop.permute.xlu0 %1319
        %1321 = vrot.lane.b32.xlu0 %v1225, 8
        %v1322 = vpop.permute.xlu0 %1321
        %v1323 = vmul.f32 %v1260, %v1222
        %v1324 = vmul.f32 %v1260, %v1223
        %v1325 = vmul.f32 %v1260, %v1224
        %v1326 = vmul.f32 %v1260, %v1225
        %v1327 = vmul.f32 %v1261, %v1316
        %v1328 = vmul.f32 %v1261, %v1318
        %v1329 = vmul.f32 %v1261, %v1320
        %v1330 = vmul.f32 %v1261, %v1322
        %v1331 = vadd.f32 %v1323, %v1327
        %v1332 = vadd.f32 %v1324, %v1328
        %v1333 = vadd.f32 %v1325, %v1329
        %v1334 = vadd.f32 %v1326, %v1330
        %1335 = vrot.lane.b32.xlu0 %v1222, 120
        %v1336 = vpop.permute.xlu0 %1335
        %1337 = vrot.lane.b32.xlu0 %v1223, 120
        %v1338 = vpop.permute.xlu0 %1337
        %1339 = vrot.lane.b32.xlu0 %v1224, 120
        %v1340 = vpop.permute.xlu0 %1339
        %1341 = vrot.lane.b32.xlu0 %v1225, 120
        %v1342 = vpop.permute.xlu0 %1341
        %v1343 = vmul.f32 %v1264, %v1222
        %v1344 = vmul.f32 %v1264, %v1223
        %v1345 = vmul.f32 %v1264, %v1224
        %v1346 = vmul.f32 %v1264, %v1225
        %v1347 = vmul.f32 %v1265, %v1336
        %v1348 = vmul.f32 %v1265, %v1338
        %v1349 = vmul.f32 %v1265, %v1340
        %v1350 = vmul.f32 %v1265, %v1342
        %v1351 = vadd.f32 %v1343, %v1347
        %v1352 = vadd.f32 %v1344, %v1348
        %v1353 = vadd.f32 %v1345, %v1349
        %v1354 = vadd.f32 %v1346, %v1350
        %v1355 = vsub.f32 %v1351, %v1331
        %v1356 = vsub.f32 %v1352, %v1332
        %v1357 = vsub.f32 %v1353, %v1333
        %v1358 = vsub.f32 %v1354, %v1334
        %v1359 = vsub.f32 %v1311, %v1299
        %v1360 = vsub.f32 %v1312, %v1300
        %v1361 = vsub.f32 %v1313, %v1301
        %v1362 = vsub.f32 %v1314, %v1302
        %v1363 = vmul.f32 %v1234, %v1355
        %v1364 = vmul.f32 %v1235, %v1356
        %v1365 = vmul.f32 %v1236, %v1357
        %v1366 = vmul.f32 %v1237, %v1358
        %v1367 = vmul.f32 %v1238, %v1358
        %v1368 = vmul.f32 %v1239, %v1355
        %v1369 = vmul.f32 %v1240, %v1356
        %v1370 = vmul.f32 %v1241, %v1357
        %v1371 = vadd.f32 %v1363, %v1367
        %v1372 = vadd.f32 %v1364, %v1368
        %v1373 = vadd.f32 %v1365, %v1369
        %v1374 = vadd.f32 %v1366, %v1370
        %v1375 = vmul.f32 %v1355, 2.0
        %v1376 = vmul.f32 %v1356, 2.0
        %v1377 = vmul.f32 %v1357, 2.0
        %v1378 = vmul.f32 %v1358, 2.0
        %v1379 = vadd.f32 %v1371, %v1375
        %v1380 = vadd.f32 %v1372, %v1376
        %v1381 = vadd.f32 %v1373, %v1377
        %v1382 = vadd.f32 %v1374, %v1378
        %v1383 = vmul.f32 %v1250, %v1355
        %v1384 = vmul.f32 %v1251, %v1356
        %v1385 = vmul.f32 %v1252, %v1357
        %v1386 = vmul.f32 %v1253, %v1358
        %v1387 = vmul.f32 %v1254, %v1356
        %v1388 = vmul.f32 %v1255, %v1357
        %v1389 = vmul.f32 %v1256, %v1358
        %v1390 = vmul.f32 %v1257, %v1355
        %v1391 = vadd.f32 %v1383, %v1387
        %v1392 = vadd.f32 %v1384, %v1388
        %v1393 = vadd.f32 %v1385, %v1389
        %v1394 = vadd.f32 %v1386, %v1390
        %v1395 = vadd.f32 %v1379, %v1391
        %v1396 = vadd.f32 %v1380, %v1392
        %v1397 = vadd.f32 %v1381, %v1393
        %v1398 = vadd.f32 %v1382, %v1394
        %v1399 = vmul.f32 %v1395, 0.125
        %v1400 = vmul.f32 %v1396, 0.125
        %v1401 = vmul.f32 %v1397, 0.125
        %v1402 = vmul.f32 %v1398, 0.125
        %1403 = vrot.lane.b32.xlu0 %v1359, 8
        %v1404 = vpop.permute.xlu0 %1403
        %1405 = vrot.lane.b32.xlu0 %v1360, 8
        %v1406 = vpop.permute.xlu0 %1405
        %1407 = vrot.lane.b32.xlu0 %v1361, 8
        %v1408 = vpop.permute.xlu0 %1407
        %1409 = vrot.lane.b32.xlu0 %v1362, 8
        %v1410 = vpop.permute.xlu0 %1409
        %v1411 = vmul.f32 %v1260, %v1359
        %v1412 = vmul.f32 %v1260, %v1360
        %v1413 = vmul.f32 %v1260, %v1361
        %v1414 = vmul.f32 %v1260, %v1362
        %v1415 = vmul.f32 %v1261, %v1404
        %v1416 = vmul.f32 %v1261, %v1406
        %v1417 = vmul.f32 %v1261, %v1408
        %v1418 = vmul.f32 %v1261, %v1410
        %v1419 = vadd.f32 %v1411, %v1415
        %v1420 = vadd.f32 %v1412, %v1416
        %v1421 = vadd.f32 %v1413, %v1417
        %v1422 = vadd.f32 %v1414, %v1418
        %v1423 = vmul.f32 %v1359, 2.0
        %v1424 = vmul.f32 %v1360, 2.0
        %v1425 = vmul.f32 %v1361, 2.0
        %v1426 = vmul.f32 %v1362, 2.0
        %v1427 = vadd.f32 %v1419, %v1423
        %v1428 = vadd.f32 %v1420, %v1424
        %v1429 = vadd.f32 %v1421, %v1425
        %v1430 = vadd.f32 %v1422, %v1426
        %1431 = vrot.lane.b32.xlu0 %v1359, 120
        %v1432 = vpop.permute.xlu0 %1431
        %1433 = vrot.lane.b32.xlu0 %v1360, 120
        %v1434 = vpop.permute.xlu0 %1433
        %1435 = vrot.lane.b32.xlu0 %v1361, 120
        %v1436 = vpop.permute.xlu0 %1435
        %1437 = vrot.lane.b32.xlu0 %v1362, 120
        %v1438 = vpop.permute.xlu0 %1437
        %v1439 = vmul.f32 %v1264, %v1359
        %v1440 = vmul.f32 %v1264, %v1360
        %v1441 = vmul.f32 %v1264, %v1361
        %v1442 = vmul.f32 %v1264, %v1362
        %v1443 = vmul.f32 %v1265, %v1432
        %v1444 = vmul.f32 %v1265, %v1434
        %v1445 = vmul.f32 %v1265, %v1436
        %v1446 = vmul.f32 %v1265, %v1438
        %v1447 = vadd.f32 %v1439, %v1443
        %v1448 = vadd.f32 %v1440, %v1444
        %v1449 = vadd.f32 %v1441, %v1445
        %v1450 = vadd.f32 %v1442, %v1446
        %v1451 = vadd.f32 %v1427, %v1447
        %v1452 = vadd.f32 %v1428, %v1448
        %v1453 = vadd.f32 %v1429, %v1449
        %v1454 = vadd.f32 %v1430, %v1450
        %v1455 = vmul.f32 %v1451, 0.125
        %v1456 = vmul.f32 %v1452, 0.125
        %v1457 = vmul.f32 %v1453, 0.125
        %v1458 = vmul.f32 %v1454, 0.125
        %v1459 = vand.u32 2147483647, %v1399
        %v1460 = vand.u32 2147483647, %v1400
        %v1461 = vand.u32 2147483647, %v1401
        %v1462 = vand.u32 2147483647, %v1402
        %v1463 = vand.u32 2147483647, %v1455
        %v1464 = vand.u32 2147483647, %v1456
        %v1465 = vand.u32 2147483647, %v1457
        %v1466 = vand.u32 2147483647, %v1458
        %v1467 = vadd.f32 %v1459, %v1463
        %v1468 = vadd.f32 %v1460, %v1464
        %v1469 = vadd.f32 %v1461, %v1465
        %v1470 = vadd.f32 %v1462, %v1466
        %v1471 = vmul.f32 %v1467, %v1282
        %v1472 = vmul.f32 %v1468, %v1283
        %v1473 = vmul.f32 %v1469, %v1284
        %v1474 = vmul.f32 %v1470, %v1285
        %v1475 = vadd.f32 %v1471, %v1472
        %v1476 = vadd.f32 %v1475, %v1473
        %v1477 = vadd.f32 %v1476, %v1474
        %v1478 = vrot.slane %v1477, 4
        %v1479 = vadd.f32 %v1477, %v1478
        %v1480 = vrot.slane %v1479, 2
        %v1481 = vadd.f32 %v1479, %v1480
        %v1482 = vrot.slane %v1481, 1
        %v1483 = vadd.f32 %v1481, %v1482
        %v1484 = vadd.f32 %v1483, 0.0
        %v1485 = vmul.f32 %v1484, %v1290
        %vm1486 = vcmask 1040384
        %v1487 = vsel %vm1486, %v285, 0.0
        %1488 = vadd.xlane.f32.xlu0 %v1487
        %v1489 = vpop.xlane.xlu0 %1488
        %v1490 = vrot.slane %v1489, 4
        %v1491 = vadd.f32 %v1489, %v1490
        %v1492 = vrot.slane %v1491, 2
        %v1493 = vadd.f32 %v1491, %v1492
        %v1494 = vrot.slane %v1493, 1
        %v1495 = vadd.f32 %v1493, %v1494
        %s1496 = vtos %v1495
        %v1497 = vsel %vm1486, %v295, 0.0
        %1498 = vadd.xlane.f32.xlu0 %v1497
        %v1499 = vpop.xlane.xlu0 %1498
        %v1500 = vrot.slane %v1499, 4
        %v1501 = vadd.f32 %v1499, %v1500
        %v1502 = vrot.slane %v1501, 2
        %v1503 = vadd.f32 %v1501, %v1502
        %v1504 = vrot.slane %v1503, 1
        %v1505 = vadd.f32 %v1503, %v1504
        %s1506 = vtos %v1505
        %v1507 = vsel %vm1486, %v309, 0.0
        %1508 = vadd.xlane.f32.xlu0 %v1507
        %v1509 = vpop.xlane.xlu0 %1508
        %v1510 = vrot.slane %v1509, 4
        %v1511 = vadd.f32 %v1509, %v1510
        %v1512 = vrot.slane %v1511, 2
        %v1513 = vadd.f32 %v1511, %v1512
        %v1514 = vrot.slane %v1513, 1
        %v1515 = vadd.f32 %v1513, %v1514
        %s1516 = vtos %v1515
        %v1517 = vsel %vm1486, %v596, 0.0
        %1518 = vadd.xlane.f32.xlu0 %v1517
        %v1519 = vpop.xlane.xlu0 %1518
        %v1520 = vrot.slane %v1519, 4
        %v1521 = vadd.f32 %v1519, %v1520
        %v1522 = vrot.slane %v1521, 2
        %v1523 = vadd.f32 %v1521, %v1522
        %v1524 = vrot.slane %v1523, 1
        %v1525 = vadd.f32 %v1523, %v1524
        %s1526 = vtos %v1525
        %v1527 = vsel %vm1486, %v909, 0.0
        %1528 = vadd.xlane.f32.xlu0 %v1527
        %v1529 = vpop.xlane.xlu0 %1528
        %v1530 = vrot.slane %v1529, 4
        %v1531 = vadd.f32 %v1529, %v1530
        %v1532 = vrot.slane %v1531, 2
        %v1533 = vadd.f32 %v1531, %v1532
        %v1534 = vrot.slane %v1533, 1
        %v1535 = vadd.f32 %v1533, %v1534
        %s1536 = vtos %v1535
        %v1537 = vsel %vm1486, %v1205, 0.0
        %1538 = vadd.xlane.f32.xlu0 %v1537
        %v1539 = vpop.xlane.xlu0 %1538
        %v1540 = vrot.slane %v1539, 4
        %v1541 = vadd.f32 %v1539, %v1540
        %v1542 = vrot.slane %v1541, 2
        %v1543 = vadd.f32 %v1541, %v1542
        %v1544 = vrot.slane %v1543, 1
        %v1545 = vadd.f32 %v1543, %v1544
        %s1546 = vtos %v1545
        %v1547 = vsel %vm1486, %v1485, 0.0
        %1548 = vadd.xlane.f32.xlu0 %v1547
        %v1549 = vpop.xlane.xlu0 %1548
        %v1550 = vrot.slane %v1549, 4
        %v1551 = vadd.f32 %v1549, %v1550
        %v1552 = vrot.slane %v1551, 2
        %v1553 = vadd.f32 %v1551, %v1552
        %v1554 = vrot.slane %v1553, 1
        %v1555 = vadd.f32 %v1553, %v1554
        %s1556 = vtos %v1555
        %vm1557 = vcmp.eq.s32.totalorder %v250, 0
        %v1558 = vstv %s1496
        %v1559 = vsel %vm1557, %v1558, 0.0
        %vm1560 = vcmp.eq.s32.totalorder %v250, 1
        %v1561 = vstv %s1506
        %v1562 = vsel %vm1560, %v1561, %v1559
        %vm1563 = vcmp.eq.s32.totalorder %v250, 2
        %v1564 = vstv %s1516
        %v1565 = vsel %vm1563, %v1564, %v1562
        %vm1566 = vcmp.eq.s32.totalorder %v250, 3
        %v1567 = vstv %s1526
        %v1568 = vsel %vm1566, %v1567, %v1565
        %vm1569 = vcmp.eq.s32.totalorder %v250, 4
        %v1570 = vstv %s1536
        %v1571 = vsel %vm1569, %v1570, %v1568
        %vm1572 = vcmp.eq.s32.totalorder %v250, 5
        %v1573 = vstv %s1546
        %v1574 = vsel %vm1572, %v1573, %v1571
        %vm1575 = vcmp.eq.s32.totalorder %v250, 6
        %v1576 = vstv %s1556
        %v1577 = vsel %vm1575, %v1576, %v1574
        %1578 = vst [vmem:[%s243] sm:$0x1] %v1577
        %p1579 = scmp.lt.s32.totalorder %s20, 1
        %s1580 = scalar_select %p1579, %s20, 1
        %s1581 = scalar_lea.vmem %s3, %s1580
        // Predicated region
        $region41: #{mixed_loss.1} parent=31 // pred_check
          %p1582 = pneg %p116
        $region42: #{mixed_loss.1} parent=31 // pred_check_branch
          %1584 = sbr.rel (%p1582) target = $region44
        $region43: #{mixed_loss.1} parent=31 // pred_region
          _
        $region44: #{mixed_loss.1} parent=31 // pred_fallthru
          _
      $region32: #{mixed_loss.1} parent=5 // pred_fallthru
        _
      %p1585 = scmp.le.s32.totalorder 2, %s15
      // Predicated region
      $region45: #{mixed_loss.1} parent=5 // pred_check
        %p1586 = pneg %p1585
      $region46: #{mixed_loss.1} parent=5 // pred_check_branch
        %1588 = sbr.rel (%p1586) target = $region48
      $region47: #{mixed_loss.1} parent=5 // pred_region
        %s1589 = ssub.s32 %s15, 2
        // Predicated region
        $region49: #{mixed_loss.1} parent=47 // pred_check
          %p1590 = pneg %p122
        $region50: #{mixed_loss.1} parent=47 // pred_check_branch
          %1592 = sbr.rel (%p1590) target = $region52
        $region51: #{mixed_loss.1} parent=47 // pred_region
          %p1593 = scmp.lt.s32.totalorder %s21, 1
          %s1594 = scalar_select %p1593, %s21, 1
          %s1595 = scalar_lea.vmem %s3, %s1594
        $region52: #{mixed_loss.1} parent=47 // pred_fallthru
          _
      $region48: #{mixed_loss.1} parent=5 // pred_fallthru
        _
    $region6: #{mixed_loss.1} parent=1 // loop_footer
      %s19 = sadd.s32 1, %s15
    $region7: #{mixed_loss.1} parent=1 // loop_footer_branch
      %14 = sbr.rel target = $region3
    $region8: #{mixed_loss.1} parent=1 // loop_exit
      _
    %1596 = vsyncpa [#allocation3], 1
    %s1597 = scalar_lea.sflag [#allocation3], 1
    %1598 = vsyncpa %s1597, 1
    %1599 = vsyncpa [#allocation5], 1
    %s1600 = scalar_lea.sflag [#allocation5], 1
    %1601 = vsyncpa %s1600, 1

</llo_original>
